<compile_context>
chip_gen: v7x
topology: tpu7x:2x2x1
jax: 0.10.0
libtpu: 0.0.40
codegen_flags: <defaults>
</compile_context>

<pallas_src>
import functools

import jax
import jax.numpy as jnp
from jax import lax
from jax.experimental import pallas as pl
from jax.experimental.pallas import tpu as pltpu

INPUT_SIZE = 4
HIDDEN_SIZE = 64          # logical hidden size (matches the PyTorch module)
HIDDEN_PAD = 128          # hidden size padded to a full 128-lane vreg span
OUTPUT_SIZE = 4
TEMPERATURE = 0.1


def nn_sharpe_kernel(x_ref, y_ref, wih_ref, whh_ref, b_ref, wlin_ref, blin_ref,
                     out_ref, *, T, B):
    """x_ref, y_ref are time-major flattened: row r = t*B + b."""
    HP = HIDDEN_PAD
    TB = T * B
    inv_temp = jnp.float32(1.0 / TEMPERATURE)

    # ---- Hoisted input projection (+ fused bias): one matmul for all steps.
    gates_x = jnp.dot(x_ref[...], wih_ref[...],
                      preferred_element_type=jnp.float32) + b_ref[...]      # (TB, 4*HP)

    whh = whh_ref[...]                                                       # (HP, 4*HP)

    # ---- Fully unrolled LSTM recurrence; h/c live in vregs.
    h = jnp.zeros((B, HP), jnp.float32)
    c = jnp.zeros((B, HP), jnp.float32)
    hs = []
    for t in range(T):
        gates = gates_x[t * B:(t + 1) * B, :] + jnp.dot(
            h, whh, preferred_element_type=jnp.float32)                      # (B, 4*HP)
        # PyTorch gate order i, f, g, o; each gate is a clean 128-lane block.
        i_g = jax.nn.sigmoid(gates[:, 0 * HP:1 * HP])
        f_g = jax.nn.sigmoid(gates[:, 1 * HP:2 * HP])
        g_g = jnp.tanh(gates[:, 2 * HP:3 * HP])
        o_g = jax.nn.sigmoid(gates[:, 3 * HP:4 * HP])
        c = f_g * c + i_g * g_g            # padded lanes stay exactly 0
        h = o_g * jnp.tanh(c)              # padded lanes stay exactly 0
        hs.append(h)

    # ---- Deferred Linear + temperature-scaled softmax over ALL timesteps.
    h_all = jnp.concatenate(hs, axis=0)                                      # (TB, HP)
    logits = jnp.dot(h_all, wlin_ref[...],
                     preferred_element_type=jnp.float32) + blin_ref[...]     # (TB, Dout)
    scaled = logits * inv_temp
    m = jnp.max(scaled, axis=-1, keepdims=True)
    e = jnp.exp(scaled - m)
    denom = jnp.sum(e, axis=-1, keepdims=True)
    w = e * pl.reciprocal(denom, approx=True)                                # (TB, Dout)

    # ---- Portfolio returns per (t, b), then per-batch Sharpe via one-hot
    #      batch masks (no dimension-splitting reshapes).
    ret = jnp.sum(w * y_ref[...], axis=-1, keepdims=True)                    # (TB, 1)
    rows = lax.broadcasted_iota(jnp.int32, (TB, B), 0)
    cols = lax.broadcasted_iota(jnp.int32, (TB, B), 1)
    mask = (rows % B == cols).astype(jnp.float32)                            # (TB, B)
    ret_b = ret * mask                                                       # (TB, B)
    mean_r = jnp.sum(ret_b, axis=0) * jnp.float32(1.0 / T)                   # (B,)
    centered = (ret - mean_r[None, :]) * mask                                # (TB, B)
    # torch.std is unbiased (divides by N-1); eps added to std, as in the module.
    var_r = jnp.sum(centered * centered, axis=0) * jnp.float32(1.0 / (T - 1))
    std_r = jnp.sqrt(var_r) + jnp.float32(1e-12)
    sharpe = mean_r / std_r                                                  # (B,)
    out_ref[0, 0] = -(jnp.sum(sharpe) * jnp.float32(1.0 / B))                # loss


def nn_sharpe_forward(x, y, params):
    """x, y: (B, T, D) batch_first, like the PyTorch module. Returns scalar loss."""
    B, T, _ = x.shape
    # Time-major flatten outside the kernel (plain XLA): row r = t*B + b.
    x_flat = jnp.transpose(x, (1, 0, 2)).reshape(T * B, INPUT_SIZE).astype(jnp.float32)
    y_flat = jnp.transpose(y, (1, 0, 2)).reshape(T * B, OUTPUT_SIZE).astype(jnp.float32)
    wih, whh, b, wlin, blin = params

    out = pl.pallas_call(
        functools.partial(nn_sharpe_kernel, T=T, B=B),
        out_shape=jax.ShapeDtypeStruct((1, 1), jnp.float32),
        in_specs=[pl.BlockSpec(memory_space=pltpu.MemorySpace.VMEM)] * 7,
        out_specs=pl.BlockSpec(memory_space=pltpu.MemorySpace.SMEM),
    )(x_flat, y_flat, wih, whh, b, wlin, blin)
    return out[0, 0]


def init_params(key):
    """Deterministic init matching the PyTorch parameter shapes, then padded /
    pre-transposed for the x @ W kernel layout with a 128-lane gate stride.

      wih_p : (Din, 4*HP)   gate g lives in columns [g*HP, g*HP + H), rest 0
      whh_p : (HP, 4*HP)    rows >= H are 0
      b_p   : (1, 4*HP)     b_ih + b_hh in the first H lanes of each gate block
      wlin_p: (HP, Dout)    rows >= H are 0
      blin_p: (1, Dout)
    """
    H, HP = HIDDEN_SIZE, HIDDEN_PAD
    k = 1.0 / jnp.sqrt(jnp.float32(H))
    keys = jax.random.split(key, 6)
    wih = jax.random.uniform(keys[0], (4 * H, INPUT_SIZE), jnp.float32, -k, k)
    whh = jax.random.uniform(keys[1], (4 * H, H), jnp.float32, -k, k)
    b_ih = jax.random.uniform(keys[2], (4 * H,), jnp.float32, -k, k)
    b_hh = jax.random.uniform(keys[3], (4 * H,), jnp.float32, -k, k)
    wlin = jax.random.uniform(keys[4], (OUTPUT_SIZE, H), jnp.float32, -k, k)
    blin = jax.random.uniform(keys[5], (OUTPUT_SIZE,), jnp.float32, -k, k)

    wih_p = jnp.zeros((INPUT_SIZE, 4 * HP), jnp.float32)
    whh_p = jnp.zeros((HP, 4 * HP), jnp.float32)
    b_p = jnp.zeros((1, 4 * HP), jnp.float32)
    for g in range(4):
        wih_p = wih_p.at[:, g * HP:g * HP + H].set(wih[g * H:(g + 1) * H, :].T)
        whh_p = whh_p.at[:H, g * HP:g * HP + H].set(whh[g * H:(g + 1) * H, :].T)
        b_p = b_p.at[0, g * HP:g * HP + H].set(
            b_ih[g * H:(g + 1) * H] + b_hh[g * H:(g + 1) * H])
    wlin_p = jnp.zeros((HP, OUTPUT_SIZE), jnp.float32).at[:H, :].set(wlin.T)
    blin_p = blin[None, :]
    return wih_p, whh_p, b_p, wlin_p, blin_p


if __name__ == "__main__":
    key = jax.random.PRNGKey(0)
    k_params, k_x, k_y = jax.random.split(key, 3)

    B, T = 2, 8
    x = jax.random.normal(k_x, (B, T, INPUT_SIZE), jnp.float32)
    y = 0.01 * jax.random.normal(k_y, (B, T, OUTPUT_SIZE), jnp.float32)

    params = init_params(k_params)
    loss = nn_sharpe_forward(x, y, params)
    loss = jax.block_until_ready(loss)
    assert loss.shape == () and bool(jnp.isfinite(loss))
    print("KERNEL_OK")
</pallas_src>

<mosaic_0001>
module attributes {stable_mosaic.version = 11 : i64} {
  func.func @nn_sharpe_kernel(%arg0: memref<16x4xf32, #tpu.memory_space<vmem>>, %arg1: memref<16x4xf32, #tpu.memory_space<vmem>>, %arg2: memref<4x512xf32, #tpu.memory_space<vmem>>, %arg3: memref<128x512xf32, #tpu.memory_space<vmem>>, %arg4: memref<1x512xf32, #tpu.memory_space<vmem>>, %arg5: memref<128x4xf32, #tpu.memory_space<vmem>>, %arg6: memref<1x4xf32, #tpu.memory_space<vmem>>, %arg7: memref<1x1xf32, #tpu.memory_space<smem>>) attributes {dimension_semantics = [], scalar_prefetch = 0 : i64, scratch_operands = 0 : i64, tpu.core_type = #tpu.core_type<tc>} {
    %c0 = arith.constant 0 : index
    %c0_0 = arith.constant 0 : index
    %0 = vector.load %arg0[%c0, %c0_0] : memref<16x4xf32, #tpu.memory_space<vmem>>, vector<16x4xf32>
    %c0_1 = arith.constant 0 : index
    %c0_2 = arith.constant 0 : index
    %1 = vector.load %arg2[%c0_1, %c0_2] : memref<4x512xf32, #tpu.memory_space<vmem>>, vector<4x512xf32>
    %cst = arith.constant dense<0.000000e+00> : vector<16x512xf32>
    %2 = tpu.matmul %0, %1, %cst {dimension_numbers = #tpu.dot_dimension_numbers<[1], [0], [0], [1], [0, 0, 1, 1], [], []>} : vector<16x4xf32>, vector<4x512xf32>, vector<16x512xf32> -> vector<16x512xf32>
    %c0_3 = arith.constant 0 : index
    %c0_4 = arith.constant 0 : index
    %3 = vector.load %arg4[%c0_3, %c0_4] : memref<1x512xf32, #tpu.memory_space<vmem>>, vector<1x512xf32>
    %4 = vector.broadcast %3 : vector<1x512xf32> to vector<16x512xf32>
    %5 = arith.addf %2, %4 : vector<16x512xf32>
    %c0_5 = arith.constant 0 : index
    %c0_6 = arith.constant 0 : index
    %6 = vector.load %arg3[%c0_5, %c0_6] : memref<128x512xf32, #tpu.memory_space<vmem>>, vector<128x512xf32>
    %cst_7 = arith.constant 0.000000e+00 : f32
    %7 = vector.broadcast %cst_7 : f32 to vector<2x128xf32>
    %cst_8 = arith.constant 0.000000e+00 : f32
    %8 = vector.broadcast %cst_8 : f32 to vector<2x128xf32>
    %9 = vector.extract_strided_slice %5 {offsets = [0, 0], sizes = [2, 512], strides = [1, 1]} : vector<16x512xf32> to vector<2x512xf32>
    %cst_9 = arith.constant dense<0.000000e+00> : vector<2x512xf32>
    %10 = tpu.matmul %7, %6, %cst_9 {dimension_numbers = #tpu.dot_dimension_numbers<[1], [0], [0], [1], [0, 0, 1, 1], [], []>} : vector<2x128xf32>, vector<128x512xf32>, vector<2x512xf32> -> vector<2x512xf32>
    %11 = arith.addf %9, %10 : vector<2x512xf32>
    %12 = vector.extract_strided_slice %11 {offsets = [0, 0], sizes = [2, 128], strides = [1, 1]} : vector<2x512xf32> to vector<2x128xf32>
    %13 = arith.negf %12 : vector<2x128xf32>
    %14 = math.exp %13 : vector<2x128xf32>
    %cst_10 = arith.constant 1.000000e+00 : f32
    %15 = vector.broadcast %cst_10 : f32 to vector<2x128xf32>
    %16 = arith.addf %15, %14 : vector<2x128xf32>
    %17 = arith.divf %15, %16 : vector<2x128xf32>
    %18 = vector.extract_strided_slice %11 {offsets = [0, 128], sizes = [2, 128], strides = [1, 1]} : vector<2x512xf32> to vector<2x128xf32>
    %19 = arith.negf %18 : vector<2x128xf32>
    %20 = math.exp %19 : vector<2x128xf32>
    %cst_11 = arith.constant 1.000000e+00 : f32
    %21 = vector.broadcast %cst_11 : f32 to vector<2x128xf32>
    %22 = arith.addf %21, %20 : vector<2x128xf32>
    %23 = arith.divf %21, %22 : vector<2x128xf32>
    %24 = vector.extract_strided_slice %11 {offsets = [0, 256], sizes = [2, 128], strides = [1, 1]} : vector<2x512xf32> to vector<2x128xf32>
    %25 = math.tanh %24 : vector<2x128xf32>
    %26 = vector.extract_strided_slice %11 {offsets = [0, 384], sizes = [2, 128], strides = [1, 1]} : vector<2x512xf32> to vector<2x128xf32>
    %27 = arith.negf %26 : vector<2x128xf32>
    %28 = math.exp %27 : vector<2x128xf32>
    %cst_12 = arith.constant 1.000000e+00 : f32
    %29 = vector.broadcast %cst_12 : f32 to vector<2x128xf32>
    %30 = arith.addf %29, %28 : vector<2x128xf32>
    %31 = arith.divf %29, %30 : vector<2x128xf32>
    %32 = arith.mulf %23, %8 : vector<2x128xf32>
    %33 = arith.mulf %17, %25 : vector<2x128xf32>
    %34 = arith.addf %32, %33 : vector<2x128xf32>
    %35 = math.tanh %34 : vector<2x128xf32>
    %36 = arith.mulf %31, %35 : vector<2x128xf32>
    %37 = vector.extract_strided_slice %5 {offsets = [2, 0], sizes = [2, 512], strides = [1, 1]} : vector<16x512xf32> to vector<2x512xf32>
    %cst_13 = arith.constant dense<0.000000e+00> : vector<2x512xf32>
    %38 = tpu.matmul %36, %6, %cst_13 {dimension_numbers = #tpu.dot_dimension_numbers<[1], [0], [0], [1], [0, 0, 1, 1], [], []>} : vector<2x128xf32>, vector<128x512xf32>, vector<2x512xf32> -> vector<2x512xf32>
    %39 = arith.addf %37, %38 : vector<2x512xf32>
    %40 = vector.extract_strided_slice %39 {offsets = [0, 0], sizes = [2, 128], strides = [1, 1]} : vector<2x512xf32> to vector<2x128xf32>
    %41 = arith.negf %40 : vector<2x128xf32>
    %42 = math.exp %41 : vector<2x128xf32>
    %cst_14 = arith.constant 1.000000e+00 : f32
    %43 = vector.broadcast %cst_14 : f32 to vector<2x128xf32>
    %44 = arith.addf %43, %42 : vector<2x128xf32>
    %45 = arith.divf %43, %44 : vector<2x128xf32>
    %46 = vector.extract_strided_slice %39 {offsets = [0, 128], sizes = [2, 128], strides = [1, 1]} : vector<2x512xf32> to vector<2x128xf32>
    %47 = arith.negf %46 : vector<2x128xf32>
    %48 = math.exp %47 : vector<2x128xf32>
    %cst_15 = arith.constant 1.000000e+00 : f32
    %49 = vector.broadcast %cst_15 : f32 to vector<2x128xf32>
    %50 = arith.addf %49, %48 : vector<2x128xf32>
    %51 = arith.divf %49, %50 : vector<2x128xf32>
    %52 = vector.extract_strided_slice %39 {offsets = [0, 256], sizes = [2, 128], strides = [1, 1]} : vector<2x512xf32> to vector<2x128xf32>
    %53 = math.tanh %52 : vector<2x128xf32>
    %54 = vector.extract_strided_slice %39 {offsets = [0, 384], sizes = [2, 128], strides = [1, 1]} : vector<2x512xf32> to vector<2x128xf32>
    %55 = arith.negf %54 : vector<2x128xf32>
    %56 = math.exp %55 : vector<2x128xf32>
    %cst_16 = arith.constant 1.000000e+00 : f32
    %57 = vector.broadcast %cst_16 : f32 to vector<2x128xf32>
    %58 = arith.addf %57, %56 : vector<2x128xf32>
    %59 = arith.divf %57, %58 : vector<2x128xf32>
    %60 = arith.mulf %51, %34 : vector<2x128xf32>
    %61 = arith.mulf %45, %53 : vector<2x128xf32>
    %62 = arith.addf %60, %61 : vector<2x128xf32>
    %63 = math.tanh %62 : vector<2x128xf32>
    %64 = arith.mulf %59, %63 : vector<2x128xf32>
    %65 = vector.extract_strided_slice %5 {offsets = [4, 0], sizes = [2, 512], strides = [1, 1]} : vector<16x512xf32> to vector<2x512xf32>
    %cst_17 = arith.constant dense<0.000000e+00> : vector<2x512xf32>
    %66 = tpu.matmul %64, %6, %cst_17 {dimension_numbers = #tpu.dot_dimension_numbers<[1], [0], [0], [1], [0, 0, 1, 1], [], []>} : vector<2x128xf32>, vector<128x512xf32>, vector<2x512xf32> -> vector<2x512xf32>
    %67 = arith.addf %65, %66 : vector<2x512xf32>
    %68 = vector.extract_strided_slice %67 {offsets = [0, 0], sizes = [2, 128], strides = [1, 1]} : vector<2x512xf32> to vector<2x128xf32>
    %69 = arith.negf %68 : vector<2x128xf32>
    %70 = math.exp %69 : vector<2x128xf32>
    %cst_18 = arith.constant 1.000000e+00 : f32
    %71 = vector.broadcast %cst_18 : f32 to vector<2x128xf32>
    %72 = arith.addf %71, %70 : vector<2x128xf32>
    %73 = arith.divf %71, %72 : vector<2x128xf32>
    %74 = vector.extract_strided_slice %67 {offsets = [0, 128], sizes = [2, 128], strides = [1, 1]} : vector<2x512xf32> to vector<2x128xf32>
    %75 = arith.negf %74 : vector<2x128xf32>
    %76 = math.exp %75 : vector<2x128xf32>
    %cst_19 = arith.constant 1.000000e+00 : f32
    %77 = vector.broadcast %cst_19 : f32 to vector<2x128xf32>
    %78 = arith.addf %77, %76 : vector<2x128xf32>
    %79 = arith.divf %77, %78 : vector<2x128xf32>
    %80 = vector.extract_strided_slice %67 {offsets = [0, 256], sizes = [2, 128], strides = [1, 1]} : vector<2x512xf32> to vector<2x128xf32>
    %81 = math.tanh %80 : vector<2x128xf32>
    %82 = vector.extract_strided_slice %67 {offsets = [0, 384], sizes = [2, 128], strides = [1, 1]} : vector<2x512xf32> to vector<2x128xf32>
    %83 = arith.negf %82 : vector<2x128xf32>
    %84 = math.exp %83 : vector<2x128xf32>
    %cst_20 = arith.constant 1.000000e+00 : f32
    %85 = vector.broadcast %cst_20 : f32 to vector<2x128xf32>
    %86 = arith.addf %85, %84 : vector<2x128xf32>
    %87 = arith.divf %85, %86 : vector<2x128xf32>
    %88 = arith.mulf %79, %62 : vector<2x128xf32>
    %89 = arith.mulf %73, %81 : vector<2x128xf32>
    %90 = arith.addf %88, %89 : vector<2x128xf32>
    %91 = math.tanh %90 : vector<2x128xf32>
    %92 = arith.mulf %87, %91 : vector<2x128xf32>
    %93 = vector.extract_strided_slice %5 {offsets = [6, 0], sizes = [2, 512], strides = [1, 1]} : vector<16x512xf32> to vector<2x512xf32>
    %cst_21 = arith.constant dense<0.000000e+00> : vector<2x512xf32>
    %94 = tpu.matmul %92, %6, %cst_21 {dimension_numbers = #tpu.dot_dimension_numbers<[1], [0], [0], [1], [0, 0, 1, 1], [], []>} : vector<2x128xf32>, vector<128x512xf32>, vector<2x512xf32> -> vector<2x512xf32>
    %95 = arith.addf %93, %94 : vector<2x512xf32>
    %96 = vector.extract_strided_slice %95 {offsets = [0, 0], sizes = [2, 128], strides = [1, 1]} : vector<2x512xf32> to vector<2x128xf32>
    %97 = arith.negf %96 : vector<2x128xf32>
    %98 = math.exp %97 : vector<2x128xf32>
    %cst_22 = arith.constant 1.000000e+00 : f32
    %99 = vector.broadcast %cst_22 : f32 to vector<2x128xf32>
    %100 = arith.addf %99, %98 : vector<2x128xf32>
    %101 = arith.divf %99, %100 : vector<2x128xf32>
    %102 = vector.extract_strided_slice %95 {offsets = [0, 128], sizes = [2, 128], strides = [1, 1]} : vector<2x512xf32> to vector<2x128xf32>
    %103 = arith.negf %102 : vector<2x128xf32>
    %104 = math.exp %103 : vector<2x128xf32>
    %cst_23 = arith.constant 1.000000e+00 : f32
    %105 = vector.broadcast %cst_23 : f32 to vector<2x128xf32>
    %106 = arith.addf %105, %104 : vector<2x128xf32>
    %107 = arith.divf %105, %106 : vector<2x128xf32>
    %108 = vector.extract_strided_slice %95 {offsets = [0, 256], sizes = [2, 128], strides = [1, 1]} : vector<2x512xf32> to vector<2x128xf32>
    %109 = math.tanh %108 : vector<2x128xf32>
    %110 = vector.extract_strided_slice %95 {offsets = [0, 384], sizes = [2, 128], strides = [1, 1]} : vector<2x512xf32> to vector<2x128xf32>
    %111 = arith.negf %110 : vector<2x128xf32>
    %112 = math.exp %111 : vector<2x128xf32>
    %cst_24 = arith.constant 1.000000e+00 : f32
    %113 = vector.broadcast %cst_24 : f32 to vector<2x128xf32>
    %114 = arith.addf %113, %112 : vector<2x128xf32>
    %115 = arith.divf %113, %114 : vector<2x128xf32>
    %116 = arith.mulf %107, %90 : vector<2x128xf32>
    %117 = arith.mulf %101, %109 : vector<2x128xf32>
    %118 = arith.addf %116, %117 : vector<2x128xf32>
    %119 = math.tanh %118 : vector<2x128xf32>
    %120 = arith.mulf %115, %119 : vector<2x128xf32>
    %121 = vector.extract_strided_slice %5 {offsets = [8, 0], sizes = [2, 512], strides = [1, 1]} : vector<16x512xf32> to vector<2x512xf32>
    %cst_25 = arith.constant dense<0.000000e+00> : vector<2x512xf32>
    %122 = tpu.matmul %120, %6, %cst_25 {dimension_numbers = #tpu.dot_dimension_numbers<[1], [0], [0], [1], [0, 0, 1, 1], [], []>} : vector<2x128xf32>, vector<128x512xf32>, vector<2x512xf32> -> vector<2x512xf32>
    %123 = arith.addf %121, %122 : vector<2x512xf32>
    %124 = vector.extract_strided_slice %123 {offsets = [0, 0], sizes = [2, 128], strides = [1, 1]} : vector<2x512xf32> to vector<2x128xf32>
    %125 = arith.negf %124 : vector<2x128xf32>
    %126 = math.exp %125 : vector<2x128xf32>
    %cst_26 = arith.constant 1.000000e+00 : f32
    %127 = vector.broadcast %cst_26 : f32 to vector<2x128xf32>
    %128 = arith.addf %127, %126 : vector<2x128xf32>
    %129 = arith.divf %127, %128 : vector<2x128xf32>
    %130 = vector.extract_strided_slice %123 {offsets = [0, 128], sizes = [2, 128], strides = [1, 1]} : vector<2x512xf32> to vector<2x128xf32>
    %131 = arith.negf %130 : vector<2x128xf32>
    %132 = math.exp %131 : vector<2x128xf32>
    %cst_27 = arith.constant 1.000000e+00 : f32
    %133 = vector.broadcast %cst_27 : f32 to vector<2x128xf32>
    %134 = arith.addf %133, %132 : vector<2x128xf32>
    %135 = arith.divf %133, %134 : vector<2x128xf32>
    %136 = vector.extract_strided_slice %123 {offsets = [0, 256], sizes = [2, 128], strides = [1, 1]} : vector<2x512xf32> to vector<2x128xf32>
    %137 = math.tanh %136 : vector<2x128xf32>
    %138 = vector.extract_strided_slice %123 {offsets = [0, 384], sizes = [2, 128], strides = [1, 1]} : vector<2x512xf32> to vector<2x128xf32>
    %139 = arith.negf %138 : vector<2x128xf32>
    %140 = math.exp %139 : vector<2x128xf32>
    %cst_28 = arith.constant 1.000000e+00 : f32
    %141 = vector.broadcast %cst_28 : f32 to vector<2x128xf32>
    %142 = arith.addf %141, %140 : vector<2x128xf32>
    %143 = arith.divf %141, %142 : vector<2x128xf32>
    %144 = arith.mulf %135, %118 : vector<2x128xf32>
    %145 = arith.mulf %129, %137 : vector<2x128xf32>
    %146 = arith.addf %144, %145 : vector<2x128xf32>
    %147 = math.tanh %146 : vector<2x128xf32>
    %148 = arith.mulf %143, %147 : vector<2x128xf32>
    %149 = vector.extract_strided_slice %5 {offsets = [10, 0], sizes = [2, 512], strides = [1, 1]} : vector<16x512xf32> to vector<2x512xf32>
    %cst_29 = arith.constant dense<0.000000e+00> : vector<2x512xf32>
    %150 = tpu.matmul %148, %6, %cst_29 {dimension_numbers = #tpu.dot_dimension_numbers<[1], [0], [0], [1], [0, 0, 1, 1], [], []>} : vector<2x128xf32>, vector<128x512xf32>, vector<2x512xf32> -> vector<2x512xf32>
    %151 = arith.addf %149, %150 : vector<2x512xf32>
    %152 = vector.extract_strided_slice %151 {offsets = [0, 0], sizes = [2, 128], strides = [1, 1]} : vector<2x512xf32> to vector<2x128xf32>
    %153 = arith.negf %152 : vector<2x128xf32>
    %154 = math.exp %153 : vector<2x128xf32>
    %cst_30 = arith.constant 1.000000e+00 : f32
    %155 = vector.broadcast %cst_30 : f32 to vector<2x128xf32>
    %156 = arith.addf %155, %154 : vector<2x128xf32>
    %157 = arith.divf %155, %156 : vector<2x128xf32>
    %158 = vector.extract_strided_slice %151 {offsets = [0, 128], sizes = [2, 128], strides = [1, 1]} : vector<2x512xf32> to vector<2x128xf32>
    %159 = arith.negf %158 : vector<2x128xf32>
    %160 = math.exp %159 : vector<2x128xf32>
    %cst_31 = arith.constant 1.000000e+00 : f32
    %161 = vector.broadcast %cst_31 : f32 to vector<2x128xf32>
    %162 = arith.addf %161, %160 : vector<2x128xf32>
    %163 = arith.divf %161, %162 : vector<2x128xf32>
    %164 = vector.extract_strided_slice %151 {offsets = [0, 256], sizes = [2, 128], strides = [1, 1]} : vector<2x512xf32> to vector<2x128xf32>
    %165 = math.tanh %164 : vector<2x128xf32>
    %166 = vector.extract_strided_slice %151 {offsets = [0, 384], sizes = [2, 128], strides = [1, 1]} : vector<2x512xf32> to vector<2x128xf32>
    %167 = arith.negf %166 : vector<2x128xf32>
    %168 = math.exp %167 : vector<2x128xf32>
    %cst_32 = arith.constant 1.000000e+00 : f32
    %169 = vector.broadcast %cst_32 : f32 to vector<2x128xf32>
    %170 = arith.addf %169, %168 : vector<2x128xf32>
    %171 = arith.divf %169, %170 : vector<2x128xf32>
    %172 = arith.mulf %163, %146 : vector<2x128xf32>
    %173 = arith.mulf %157, %165 : vector<2x128xf32>
    %174 = arith.addf %172, %173 : vector<2x128xf32>
    %175 = math.tanh %174 : vector<2x128xf32>
    %176 = arith.mulf %171, %175 : vector<2x128xf32>
    %177 = vector.extract_strided_slice %5 {offsets = [12, 0], sizes = [2, 512], strides = [1, 1]} : vector<16x512xf32> to vector<2x512xf32>
    %cst_33 = arith.constant dense<0.000000e+00> : vector<2x512xf32>
    %178 = tpu.matmul %176, %6, %cst_33 {dimension_numbers = #tpu.dot_dimension_numbers<[1], [0], [0], [1], [0, 0, 1, 1], [], []>} : vector<2x128xf32>, vector<128x512xf32>, vector<2x512xf32> -> vector<2x512xf32>
    %179 = arith.addf %177, %178 : vector<2x512xf32>
    %180 = vector.extract_strided_slice %179 {offsets = [0, 0], sizes = [2, 128], strides = [1, 1]} : vector<2x512xf32> to vector<2x128xf32>
    %181 = arith.negf %180 : vector<2x128xf32>
    %182 = math.exp %181 : vector<2x128xf32>
    %cst_34 = arith.constant 1.000000e+00 : f32
    %183 = vector.broadcast %cst_34 : f32 to vector<2x128xf32>
    %184 = arith.addf %183, %182 : vector<2x128xf32>
    %185 = arith.divf %183, %184 : vector<2x128xf32>
    %186 = vector.extract_strided_slice %179 {offsets = [0, 128], sizes = [2, 128], strides = [1, 1]} : vector<2x512xf32> to vector<2x128xf32>
    %187 = arith.negf %186 : vector<2x128xf32>
    %188 = math.exp %187 : vector<2x128xf32>
    %cst_35 = arith.constant 1.000000e+00 : f32
    %189 = vector.broadcast %cst_35 : f32 to vector<2x128xf32>
    %190 = arith.addf %189, %188 : vector<2x128xf32>
    %191 = arith.divf %189, %190 : vector<2x128xf32>
    %192 = vector.extract_strided_slice %179 {offsets = [0, 256], sizes = [2, 128], strides = [1, 1]} : vector<2x512xf32> to vector<2x128xf32>
    %193 = math.tanh %192 : vector<2x128xf32>
    %194 = vector.extract_strided_slice %179 {offsets = [0, 384], sizes = [2, 128], strides = [1, 1]} : vector<2x512xf32> to vector<2x128xf32>
    %195 = arith.negf %194 : vector<2x128xf32>
    %196 = math.exp %195 : vector<2x128xf32>
    %cst_36 = arith.constant 1.000000e+00 : f32
    %197 = vector.broadcast %cst_36 : f32 to vector<2x128xf32>
    %198 = arith.addf %197, %196 : vector<2x128xf32>
    %199 = arith.divf %197, %198 : vector<2x128xf32>
    %200 = arith.mulf %191, %174 : vector<2x128xf32>
    %201 = arith.mulf %185, %193 : vector<2x128xf32>
    %202 = arith.addf %200, %201 : vector<2x128xf32>
    %203 = math.tanh %202 : vector<2x128xf32>
    %204 = arith.mulf %199, %203 : vector<2x128xf32>
    %205 = vector.extract_strided_slice %5 {offsets = [14, 0], sizes = [2, 512], strides = [1, 1]} : vector<16x512xf32> to vector<2x512xf32>
    %cst_37 = arith.constant dense<0.000000e+00> : vector<2x512xf32>
    %206 = tpu.matmul %204, %6, %cst_37 {dimension_numbers = #tpu.dot_dimension_numbers<[1], [0], [0], [1], [0, 0, 1, 1], [], []>} : vector<2x128xf32>, vector<128x512xf32>, vector<2x512xf32> -> vector<2x512xf32>
    %207 = arith.addf %205, %206 : vector<2x512xf32>
    %208 = vector.extract_strided_slice %207 {offsets = [0, 0], sizes = [2, 128], strides = [1, 1]} : vector<2x512xf32> to vector<2x128xf32>
    %209 = arith.negf %208 : vector<2x128xf32>
    %210 = math.exp %209 : vector<2x128xf32>
    %cst_38 = arith.constant 1.000000e+00 : f32
    %211 = vector.broadcast %cst_38 : f32 to vector<2x128xf32>
    %212 = arith.addf %211, %210 : vector<2x128xf32>
    %213 = arith.divf %211, %212 : vector<2x128xf32>
    %214 = vector.extract_strided_slice %207 {offsets = [0, 128], sizes = [2, 128], strides = [1, 1]} : vector<2x512xf32> to vector<2x128xf32>
    %215 = arith.negf %214 : vector<2x128xf32>
    %216 = math.exp %215 : vector<2x128xf32>
    %cst_39 = arith.constant 1.000000e+00 : f32
    %217 = vector.broadcast %cst_39 : f32 to vector<2x128xf32>
    %218 = arith.addf %217, %216 : vector<2x128xf32>
    %219 = arith.divf %217, %218 : vector<2x128xf32>
    %220 = vector.extract_strided_slice %207 {offsets = [0, 256], sizes = [2, 128], strides = [1, 1]} : vector<2x512xf32> to vector<2x128xf32>
    %221 = math.tanh %220 : vector<2x128xf32>
    %222 = vector.extract_strided_slice %207 {offsets = [0, 384], sizes = [2, 128], strides = [1, 1]} : vector<2x512xf32> to vector<2x128xf32>
    %223 = arith.negf %222 : vector<2x128xf32>
    %224 = math.exp %223 : vector<2x128xf32>
    %cst_40 = arith.constant 1.000000e+00 : f32
    %225 = vector.broadcast %cst_40 : f32 to vector<2x128xf32>
    %226 = arith.addf %225, %224 : vector<2x128xf32>
    %227 = arith.divf %225, %226 : vector<2x128xf32>
    %228 = arith.mulf %219, %202 : vector<2x128xf32>
    %229 = arith.mulf %213, %221 : vector<2x128xf32>
    %230 = arith.addf %228, %229 : vector<2x128xf32>
    %231 = math.tanh %230 : vector<2x128xf32>
    %232 = arith.mulf %227, %231 : vector<2x128xf32>
    %233 = tpu.concatenate %36, %64, %92, %120, %148, %176, %204, %232 in 0 : vector<2x128xf32>, vector<2x128xf32>, vector<2x128xf32>, vector<2x128xf32>, vector<2x128xf32>, vector<2x128xf32>, vector<2x128xf32>, vector<2x128xf32> -> vector<16x128xf32>
    %c0_41 = arith.constant 0 : index
    %c0_42 = arith.constant 0 : index
    %234 = vector.load %arg5[%c0_41, %c0_42] : memref<128x4xf32, #tpu.memory_space<vmem>>, vector<128x4xf32>
    %cst_43 = arith.constant dense<0.000000e+00> : vector<16x4xf32>
    %235 = tpu.matmul %233, %234, %cst_43 {dimension_numbers = #tpu.dot_dimension_numbers<[1], [0], [0], [1], [0, 0, 1, 1], [], []>} : vector<16x128xf32>, vector<128x4xf32>, vector<16x4xf32> -> vector<16x4xf32>
    %c0_44 = arith.constant 0 : index
    %c0_45 = arith.constant 0 : index
    %236 = vector.load %arg6[%c0_44, %c0_45] : memref<1x4xf32, #tpu.memory_space<vmem>>, vector<1x4xf32>
    %237 = vector.broadcast %236 : vector<1x4xf32> to vector<16x4xf32>
    %238 = arith.addf %235, %237 : vector<16x4xf32>
    %cst_46 = arith.constant 1.000000e+01 : f32
    %239 = vector.broadcast %cst_46 : f32 to vector<16x4xf32>
    %240 = arith.mulf %238, %239 : vector<16x4xf32>
    %cst_47 = arith.constant dense<0xFF800000> : vector<16xf32>
    %241 = vector.multi_reduction <maximumf>, %240, %cst_47 [1] : vector<16x4xf32> to vector<16xf32>
    %242 = vector.shape_cast %241 : vector<16xf32> to vector<16x1xf32>
    %243 = vector.broadcast %242 : vector<16x1xf32> to vector<16x4xf32>
    %244 = arith.subf %240, %243 : vector<16x4xf32>
    %245 = math.exp %244 : vector<16x4xf32>
    %cst_48 = arith.constant dense<0.000000e+00> : vector<16xf32>
    %246 = vector.multi_reduction <add>, %245, %cst_48 [1] : vector<16x4xf32> to vector<16xf32>
    %247 = vector.shape_cast %246 : vector<16xf32> to vector<16x1xf32>
    %248 = tpu.reciprocal %247 {approx = true} : vector<16x1xf32> -> vector<16x1xf32>
    %249 = vector.broadcast %248 : vector<16x1xf32> to vector<16x4xf32>
    %250 = arith.mulf %245, %249 : vector<16x4xf32>
    %c0_49 = arith.constant 0 : index
    %c0_50 = arith.constant 0 : index
    %251 = vector.load %arg1[%c0_49, %c0_50] : memref<16x4xf32, #tpu.memory_space<vmem>>, vector<16x4xf32>
    %252 = arith.mulf %250, %251 : vector<16x4xf32>
    %cst_51 = arith.constant dense<0.000000e+00> : vector<16xf32>
    %253 = vector.multi_reduction <add>, %252, %cst_51 [1] : vector<16x4xf32> to vector<16xf32>
    %254 = vector.shape_cast %253 : vector<16xf32> to vector<16x1xf32>
    %255 = tpu.iota {dimensions = array<i32: 0>} : vector<16x2xi32>
    %256 = tpu.iota {dimensions = array<i32: 1>} : vector<16x2xi32>
    %c2_i32 = arith.constant 2 : i32
    %c0_i32 = arith.constant 0 : i32
    %257 = arith.cmpi eq, %c2_i32, %c0_i32 : i32
    %c1_i32 = arith.constant 1 : i32
    %258 = arith.select %257, %c1_i32, %c2_i32 : i32
    %259 = vector.broadcast %258 : i32 to vector<16x2xi32>
    %260 = arith.remsi %255, %259 : vector<16x2xi32>
    %c0_i32_52 = arith.constant 0 : i32
    %261 = vector.broadcast %c0_i32_52 : i32 to vector<16x2xi32>
    %262 = arith.cmpi ne, %260, %261 : vector<16x2xi32>
    %c0_i32_53 = arith.constant 0 : i32
    %263 = vector.broadcast %c0_i32_53 : i32 to vector<16x2xi32>
    %264 = arith.cmpi slt, %260, %263 : vector<16x2xi32>
    %c0_i32_54 = arith.constant 0 : i32
    %265 = arith.cmpi slt, %258, %c0_i32_54 : i32
    %266 = vector.broadcast %265 : i1 to vector<16x2xi1>
    %267 = vector.broadcast %266 : vector<16x2xi1> to vector<16x2xi1>
    %268 = arith.xori %264, %267 : vector<16x2xi1>
    %269 = arith.andi %268, %262 : vector<16x2xi1>
    %270 = vector.broadcast %258 : i32 to vector<16x2xi32>
    %271 = arith.addi %260, %270 : vector<16x2xi32>
    %272 = arith.select %269, %271, %260 : vector<16x2xi1>, vector<16x2xi32>
    %273 = arith.cmpi eq, %272, %256 : vector<16x2xi32>
    %274 = arith.extui %273 : vector<16x2xi1> to vector<16x2xi32>
    %275 = arith.sitofp %274 : vector<16x2xi32> to vector<16x2xf32>
    %276 = vector.broadcast %254 : vector<16x1xf32> to vector<16x2xf32>
    %277 = arith.mulf %276, %275 : vector<16x2xf32>
    %cst_55 = arith.constant dense<0.000000e+00> : vector<2xf32>
    %278 = vector.multi_reduction <add>, %277, %cst_55 [0] : vector<16x2xf32> to vector<2xf32>
    %cst_56 = arith.constant 1.250000e-01 : f32
    %279 = vector.broadcast %cst_56 : f32 to vector<2xf32>
    %280 = arith.mulf %278, %279 : vector<2xf32>
    %281 = vector.shape_cast %280 : vector<2xf32> to vector<1x2xf32>
    %282 = vector.broadcast %254 : vector<16x1xf32> to vector<16x2xf32>
    %283 = vector.broadcast %281 : vector<1x2xf32> to vector<16x2xf32>
    %284 = arith.subf %282, %283 : vector<16x2xf32>
    %285 = arith.mulf %284, %275 : vector<16x2xf32>
    %286 = arith.mulf %285, %285 : vector<16x2xf32>
    %cst_57 = arith.constant dense<0.000000e+00> : vector<2xf32>
    %287 = vector.multi_reduction <add>, %286, %cst_57 [0] : vector<16x2xf32> to vector<2xf32>
    %cst_58 = arith.constant 0.142857149 : f32
    %288 = vector.broadcast %cst_58 : f32 to vector<2xf32>
    %289 = arith.mulf %287, %288 : vector<2xf32>
    %290 = math.sqrt %289 : vector<2xf32>
    %cst_59 = arith.constant 9.99999996E-13 : f32
    %291 = vector.broadcast %cst_59 : f32 to vector<2xf32>
    %292 = arith.addf %290, %291 : vector<2xf32>
    %293 = arith.divf %280, %292 : vector<2xf32>
    %294 = vector.shape_cast %293 : vector<2xf32> to vector<1x2xf32>
    %cst_60 = arith.constant dense<0.000000e+00> : vector<1xf32>
    %295 = vector.multi_reduction <add>, %294, %cst_60 [1] : vector<1x2xf32> to vector<1xf32>
    %296 = vector.shape_cast %295 : vector<1xf32> to vector<1x1xf32>
    %297 = vector.extract %296[0, 0] : f32 from vector<1x1xf32>
    %cst_61 = arith.constant 5.000000e-01 : f32
    %298 = arith.mulf %297, %cst_61 : f32
    %cst_62 = arith.constant 0.000000e+00 : f32
    %299 = arith.subf %cst_62, %298 : f32
    %c0_63 = arith.constant 0 : index
    %c0_64 = arith.constant 0 : index
    %300 = memref.load %arg7[%c0_63, %c0_64] : memref<1x1xf32, #tpu.memory_space<smem>>
    memref.store %299, %arg7[%c0_63, %c0_64] : memref<1x1xf32, #tpu.memory_space<smem>>
    return
  }
}

</mosaic_0001>

<llo_original>
// kernel: tpu_custom_call.1
$region0: #{tpu_custom_call.1}
  #allocation0 [shape = 'u32[]', space=smem, size = 0x4, offset = 0x4, fixed_abs, tag = 'smem constant byte address 0x4 - core index']
  #allocation1 [shape = 'u32[144,128]{1,0:T(1,128)}', space=vmem, size = 0x12000, scoped, tag = 'internal scratch']
  %s0 = inlined_call_operand.vmem [shape: f32[16,4], index: 0, kind: input, shape index: {}]
  %s1 = inlined_call_operand.vmem [shape: f32[16,4], index: 1, kind: input, shape index: {}]
  %s2 = inlined_call_operand.vmem [shape: f32[4,512], index: 2, kind: input, shape index: {}]
  %s3 = inlined_call_operand.hbm [shape: f32[128,512], index: 3, kind: input, shape index: {}]
  %s4 = inlined_call_operand.vmem [shape: f32[1,512], index: 4, kind: input, shape index: {}]
  %s5 = inlined_call_operand.vmem [shape: f32[128,4], index: 5, kind: input, shape index: {}]
  %s6 = inlined_call_operand.vmem [shape: f32[1,4], index: 6, kind: input, shape index: {}]
  %s7 = inlined_call_operand.hbm [shape: f32[1,1], index: 7, kind: output, shape index: {}]
  %s8 = sld [smem:[#allocation0]]
  $region42: #{tpu_custom_call.1} parent=0
    _
  %s10 = ssub.s32 1, %s8
  %s11 = scalar_select 0, %s10, %s8
  $region1: #{tpu_custom_call.1} parent=0
    #allocation2 [shape = 'u8[262144]{0}', space=vmem, size = 0x40000, scoped, tag = 'input window, operand 3, single buffered']
    #allocation3 [shape = 's32[1]{0}', space=sflag, size = 0x4, scoped, tag = 'scoped memory for tpu_custom_call.1']
    #allocation4 [shape = 's32[1]{0}', space=sflag, size = 0x4, scoped, tag = 'scoped memory for tpu_custom_call.1']
    #allocation5 [shape = 'u8[512]{0}', space=smem, size = 0x200, scoped, tag = 'output window, operand 0, single buffered']
    %12 = vsyncpa [#allocation3], 0
    %13 = vsyncpa [#allocation4], 0
    // Predicated region
    $region2: #{tpu_custom_call.1} parent=1 // pred_check
      _
    $region3: #{tpu_custom_call.1} parent=1 // pred_check_branch
      %15 = sbr.rel (0) target = $region5
    $region4: #{tpu_custom_call.1} parent=1 // pred_region
      _
    $region5: #{tpu_custom_call.1} parent=1 // pred_fallthru
      _
    // Predicated region
    $region6: #{tpu_custom_call.1} parent=1 // pred_check
      _
    $region7: #{tpu_custom_call.1} parent=1 // pred_check_branch
      %17 = sbr.rel (0) target = $region9
    $region8: #{tpu_custom_call.1} parent=1 // pred_region
      _
    $region9: #{tpu_custom_call.1} parent=1 // pred_fallthru
      _
    // Predicated region
    $region10: #{tpu_custom_call.1} parent=1 // pred_check
      _
    $region11: #{tpu_custom_call.1} parent=1 // pred_check_branch
      %19 = sbr.rel (0) target = $region13
    $region12: #{tpu_custom_call.1} parent=1 // pred_region
      _
    $region13: #{tpu_custom_call.1} parent=1 // pred_fallthru
      _
    // Predicated region
    $region14: #{tpu_custom_call.1} parent=1 // pred_check
      _
    $region15: #{tpu_custom_call.1} parent=1 // pred_check_branch
      %21 = sbr.rel (0) target = $region17
    $region16: #{tpu_custom_call.1} parent=1 // pred_region
      %s23 = ssub.s32 8192, 8192
      %24 = vsyncadd [#allocation3], %s23
      %s25 = sshll.u32 [#allocation2], 4
      %s26 = int_to_ptr.vmem [resolvable:$true] %s25
      %31 = dma.hbm_to_vmem [thread:$0]  %s3, 8192, %s26, [#allocation3], 512, 512, 32
    $region17: #{tpu_custom_call.1} parent=1 // pred_fallthru
      _
    // Predicated region
    $region18: #{tpu_custom_call.1} parent=1 // pred_check
      _
    $region19: #{tpu_custom_call.1} parent=1 // pred_check_branch
      %33 = sbr.rel (0) target = $region21
    $region20: #{tpu_custom_call.1} parent=1 // pred_region
      _
    $region21: #{tpu_custom_call.1} parent=1 // pred_fallthru
      _
    // Predicated region
    $region22: #{tpu_custom_call.1} parent=1 // pred_check
      _
    $region23: #{tpu_custom_call.1} parent=1 // pred_check_branch
      %35 = sbr.rel (0) target = $region25
    $region24: #{tpu_custom_call.1} parent=1 // pred_region
      _
    $region25: #{tpu_custom_call.1} parent=1 // pred_fallthru
      _
    // Predicated region
    $region26: #{tpu_custom_call.1} parent=1 // pred_check
      _
    $region27: #{tpu_custom_call.1} parent=1 // pred_check_branch
      %37 = sbr.rel (0) target = $region29
    $region28: #{tpu_custom_call.1} parent=1 // pred_region
      _
    $region29: #{tpu_custom_call.1} parent=1 // pred_fallthru
      _
    // Predicated region
    $region30: #{tpu_custom_call.1} parent=1 // pred_check
      _
    $region31: #{tpu_custom_call.1} parent=1 // pred_check_branch
      %39 = sbr.rel (0) target = $region33
    $region32: #{tpu_custom_call.1} parent=1 // pred_region
      %40 = dma.done [#allocation3], 8192
    $region33: #{tpu_custom_call.1} parent=1 // pred_fallthru
      _
    %v41 = vld [vmem:[%s0] sm:$0xff]
    %v42 = vld [vmem:[%s0 + $0x8] sm:$0xff]
    %v43 = vld [vmem:[%s2] sm:$0xff]
    %v44 = vld [vmem:[%s2 + $0x8] sm:$0xff]
    %v45 = vld [vmem:[%s4] sm:$0xf]
    %v47 = vlaneseq
    %v48 = vshrl.u32 %v47, 7
    %v49 = vsub.s32 0, %v48
    %v50 = vrot.slane %v45, %v49
    %v51 = vlaneseq
    %v52 = vshrl.u32 %v51, 7
    %v53 = vsub.s32 1, %v52
    %v54 = vrot.slane %v45, %v53
    %v55 = vlaneseq
    %v56 = vshrl.u32 %v55, 7
    %v57 = vsub.s32 2, %v56
    %v58 = vrot.slane %v45, %v57
    %v59 = vlaneseq
    %v60 = vshrl.u32 %v59, 7
    %v61 = vsub.s32 3, %v60
    %v62 = vrot.slane %v45, %v61
    %v69 = vcombine.high %v43, %v43
    %v70 = vcombine.high %v44, %v44
    %vm71 = vcmask 31744
    %v73 = vsel %vm71, %v41, 0
    %v76 = vsel %vm71, %v42, 0
    %vm78 = vcmask 1043456
    %v79 = vsel %vm78, %v43, 0
    %v81 = vsel %vm78, %v69, 0
    %v83 = vsel %vm78, %v44, 0
    %v85 = vsel %vm78, %v70, 0
    %87 = vmatprep.subr.mxu0 %v81
    %88 = vmatpush1.msra.mxu0 %v79
    %89 = vmatprep.subr.mxu0 0.0
    %90 = vmatpush1.msra.mxu0 0.0
    %91 = vmatprep.subr.mxu0 0.0
    %92 = vmatpush1.msra.mxu0 0.0
    %93 = vmatprep.subr.mxu0 0.0
    %94 = vmatpush1.msra.mxu0 0.0
    %95 = vmatprep.subr.mxu0 0.0
    %96 = vmatpush1.msra.mxu0 0.0
    %97 = vmatprep.subr.mxu0 0.0
    %98 = vmatpush1.msra.mxu0 0.0
    %99 = vmatprep.subr.mxu0 0.0
    %100 = vmatpush1.msra.mxu0 0.0
    %101 = vmatprep.subr.mxu0 0.0
    %102 = vmatpush1.msra.mxu0 0.0
    %103 = vmatprep.subr.mxu0 0.0
    %104 = vmatpush1.msra.mxu0 0.0
    %105 = vmatprep.subr.mxu0 0.0
    %106 = vmatpush1.msra.mxu0 0.0
    %107 = vmatprep.subr.mxu0 0.0
    %108 = vmatpush1.msra.mxu0 0.0
    %109 = vmatprep.subr.mxu0 0.0
    %110 = vmatpush1.msra.mxu0 0.0
    %111 = vmatprep.subr.mxu0 0.0
    %112 = vmatpush1.msra.mxu0 0.0
    %113 = vmatprep.subr.mxu0 0.0
    %114 = vmatpush1.msra.mxu0 0.0
    %115 = vmatprep.subr.mxu0 0.0
    %116 = vmatpush1.msra.mxu0 0.0
    %117 = vmatprep.subr.mxu0 0.0
    %118 = vmatpush1.msra.mxu0 0.0
    %119 = vmatprep.subr.mxu0 0.0
    %120 = vmatpush1.msra.mxu0 0.0
    %121 = vmatprep.subr.mxu0 0.0
    %122 = vmatpush1.msra.mxu0 0.0
    %123 = vmatprep.subr.mxu0 0.0
    %124 = vmatpush1.msra.mxu0 0.0
    %125 = vmatprep.subr.mxu0 0.0
    %126 = vmatpush1.msra.mxu0 0.0
    %127 = vmatprep.subr.mxu0 0.0
    %128 = vmatpush1.msra.mxu0 0.0
    %129 = vmatprep.subr.mxu0 0.0
    %130 = vmatpush1.msra.mxu0 0.0
    %131 = vmatprep.subr.mxu0 0.0
    %132 = vmatpush1.msra.mxu0 0.0
    %133 = vmatprep.subr.mxu0 0.0
    %134 = vmatpush1.msra.mxu0 0.0
    %135 = vmatprep.subr.mxu0 0.0
    %136 = vmatpush1.msra.mxu0 0.0
    %137 = vmatprep.subr.mxu0 0.0
    %138 = vmatpush1.msra.mxu0 0.0
    %139 = vmatprep.subr.mxu0 0.0
    %140 = vmatpush1.msra.mxu0 0.0
    %141 = vmatprep.subr.mxu0 0.0
    %142 = vmatpush1.msra.mxu0 0.0
    %143 = vmatprep.subr.mxu0 0.0
    %144 = vmatpush1.msra.mxu0 0.0
    %145 = vmatprep.subr.mxu0 0.0
    %146 = vmatpush1.msra.mxu0 0.0
    %147 = vmatprep.subr.mxu0 0.0
    %148 = vmatpush1.msra.mxu0 0.0
    %149 = vmatprep.subr.mxu0 0.0
    %150 = vmatpush1.msra.mxu0 0.0
    %151 = vmatprep.mubr.f32.mxu0 0.0
    %152 = vmatmul.mubr.f32.gmra.mrb[0].mxu0 %v73
    %v153 = vpop.f32.mrb[0].mxu0
    %v154 = vadd.f32 %v50, %v153
    %v155 = vpop.f32.mrb[0].mxu0
    %v156 = vadd.f32 %v54, %v155
    %157 = vmatprep.mubr.f32.mxu0 0.0
    %158 = vmatmul.mubr.f32.gmra.mrb[0].mxu0 %v76
    %v159 = vpop.f32.mrb[0].mxu0
    %v160 = vadd.f32 %v50, %v159
    %v161 = vpop.f32.mrb[0].mxu0
    %v162 = vadd.f32 %v54, %v161
    %163 = vdwg.mxu0
    %164 = vmatprep.subr.mxu0 %v85
    %165 = vmatpush1.msra.mxu0 %v83
    %166 = vmatprep.subr.mxu0 0.0
    %167 = vmatpush1.msra.mxu0 0.0
    %168 = vmatprep.subr.mxu0 0.0
    %169 = vmatpush1.msra.mxu0 0.0
    %170 = vmatprep.subr.mxu0 0.0
    %171 = vmatpush1.msra.mxu0 0.0
    %172 = vmatprep.subr.mxu0 0.0
    %173 = vmatpush1.msra.mxu0 0.0
    %174 = vmatprep.subr.mxu0 0.0
    %175 = vmatpush1.msra.mxu0 0.0
    %176 = vmatprep.subr.mxu0 0.0
    %177 = vmatpush1.msra.mxu0 0.0
    %178 = vmatprep.subr.mxu0 0.0
    %179 = vmatpush1.msra.mxu0 0.0
    %180 = vmatprep.subr.mxu0 0.0
    %181 = vmatpush1.msra.mxu0 0.0
    %182 = vmatprep.subr.mxu0 0.0
    %183 = vmatpush1.msra.mxu0 0.0
    %184 = vmatprep.subr.mxu0 0.0
    %185 = vmatpush1.msra.mxu0 0.0
    %186 = vmatprep.subr.mxu0 0.0
    %187 = vmatpush1.msra.mxu0 0.0
    %188 = vmatprep.subr.mxu0 0.0
    %189 = vmatpush1.msra.mxu0 0.0
    %190 = vmatprep.subr.mxu0 0.0
    %191 = vmatpush1.msra.mxu0 0.0
    %192 = vmatprep.subr.mxu0 0.0
    %193 = vmatpush1.msra.mxu0 0.0
    %194 = vmatprep.subr.mxu0 0.0
    %195 = vmatpush1.msra.mxu0 0.0
    %196 = vmatprep.subr.mxu0 0.0
    %197 = vmatpush1.msra.mxu0 0.0
    %198 = vmatprep.subr.mxu0 0.0
    %199 = vmatpush1.msra.mxu0 0.0
    %200 = vmatprep.subr.mxu0 0.0
    %201 = vmatpush1.msra.mxu0 0.0
    %202 = vmatprep.subr.mxu0 0.0
    %203 = vmatpush1.msra.mxu0 0.0
    %204 = vmatprep.subr.mxu0 0.0
    %205 = vmatpush1.msra.mxu0 0.0
    %206 = vmatprep.subr.mxu0 0.0
    %207 = vmatpush1.msra.mxu0 0.0
    %208 = vmatprep.subr.mxu0 0.0
    %209 = vmatpush1.msra.mxu0 0.0
    %210 = vmatprep.subr.mxu0 0.0
    %211 = vmatpush1.msra.mxu0 0.0
    %212 = vmatprep.subr.mxu0 0.0
    %213 = vmatpush1.msra.mxu0 0.0
    %214 = vmatprep.subr.mxu0 0.0
    %215 = vmatpush1.msra.mxu0 0.0
    %216 = vmatprep.subr.mxu0 0.0
    %217 = vmatpush1.msra.mxu0 0.0
    %218 = vmatprep.subr.mxu0 0.0
    %219 = vmatpush1.msra.mxu0 0.0
    %220 = vmatprep.subr.mxu0 0.0
    %221 = vmatpush1.msra.mxu0 0.0
    %222 = vmatprep.subr.mxu0 0.0
    %223 = vmatpush1.msra.mxu0 0.0
    %224 = vmatprep.subr.mxu0 0.0
    %225 = vmatpush1.msra.mxu0 0.0
    %226 = vmatprep.subr.mxu0 0.0
    %227 = vmatpush1.msra.mxu0 0.0
    %228 = vmatprep.mubr.f32.mxu0 0.0
    %229 = vmatmul.mubr.f32.gmra.mrb[0].mxu0 %v73
    %v230 = vpop.f32.mrb[0].mxu0
    %v231 = vadd.f32 %v58, %v230
    %v232 = vpop.f32.mrb[0].mxu0
    %v233 = vadd.f32 %v62, %v232
    %234 = vmatprep.mubr.f32.mxu0 0.0
    %235 = vmatmul.mubr.f32.gmra.mrb[0].mxu0 %v76
    %v236 = vpop.f32.mrb[0].mxu0
    %v237 = vadd.f32 %v58, %v236
    %v238 = vpop.f32.mrb[0].mxu0
    %v239 = vadd.f32 %v62, %v238
    %240 = vdwg.mxu0
    %v241 = vld [vmem:[#allocation2] sm:$0xff]
    %v242 = vld [vmem:[#allocation2 + $0x8] sm:$0xff]
    %v243 = vld [vmem:[#allocation2 + $0x10] sm:$0xff]
    %v244 = vld [vmem:[#allocation2 + $0x18] sm:$0xff]
    %v245 = vld [vmem:[#allocation2 + $0x20] sm:$0xff]
    %v246 = vld [vmem:[#allocation2 + $0x28] sm:$0xff]
    %v247 = vld [vmem:[#allocation2 + $0x30] sm:$0xff]
    %v248 = vld [vmem:[#allocation2 + $0x38] sm:$0xff]
    %v249 = vld [vmem:[#allocation2 + $0x40] sm:$0xff]
    %v250 = vld [vmem:[#allocation2 + $0x48] sm:$0xff]
    %v251 = vld [vmem:[#allocation2 + $0x50] sm:$0xff]
    %v252 = vld [vmem:[#allocation2 + $0x58] sm:$0xff]
    %v253 = vld [vmem:[#allocation2 + $0x60] sm:$0xff]
    %v254 = vld [vmem:[#allocation2 + $0x68] sm:$0xff]
    %v255 = vld [vmem:[#allocation2 + $0x70] sm:$0xff]
    %v256 = vld [vmem:[#allocation2 + $0x78] sm:$0xff]
    %v257 = vld [vmem:[#allocation2 + $0x80] sm:$0xff]
    %v258 = vld [vmem:[#allocation2 + $0x88] sm:$0xff]
    %v259 = vld [vmem:[#allocation2 + $0x90] sm:$0xff]
    %v260 = vld [vmem:[#allocation2 + $0x98] sm:$0xff]
    %v261 = vld [vmem:[#allocation2 + $0xa0] sm:$0xff]
    %v262 = vld [vmem:[#allocation2 + $0xa8] sm:$0xff]
    %v263 = vld [vmem:[#allocation2 + $0xb0] sm:$0xff]
    %v264 = vld [vmem:[#allocation2 + $0xb8] sm:$0xff]
    %v265 = vld [vmem:[#allocation2 + $0xc0] sm:$0xff]
    %v266 = vld [vmem:[#allocation2 + $0xc8] sm:$0xff]
    %v267 = vld [vmem:[#allocation2 + $0xd0] sm:$0xff]
    %v268 = vld [vmem:[#allocation2 + $0xd8] sm:$0xff]
    %v269 = vld [vmem:[#allocation2 + $0xe0] sm:$0xff]
    %v270 = vld [vmem:[#allocation2 + $0xe8] sm:$0xff]
    %v271 = vld [vmem:[#allocation2 + $0xf0] sm:$0xff]
    %v272 = vld [vmem:[#allocation2 + $0xf8] sm:$0xff]
    %v273 = vld [vmem:[#allocation2 + $0x100] sm:$0xff]
    %v274 = vld [vmem:[#allocation2 + $0x108] sm:$0xff]
    %v275 = vld [vmem:[#allocation2 + $0x110] sm:$0xff]
    %v276 = vld [vmem:[#allocation2 + $0x118] sm:$0xff]
    %v277 = vld [vmem:[#allocation2 + $0x120] sm:$0xff]
    %v278 = vld [vmem:[#allocation2 + $0x128] sm:$0xff]
    %v279 = vld [vmem:[#allocation2 + $0x130] sm:$0xff]
    %v280 = vld [vmem:[#allocation2 + $0x138] sm:$0xff]
    %v281 = vld [vmem:[#allocation2 + $0x140] sm:$0xff]
    %v282 = vld [vmem:[#allocation2 + $0x148] sm:$0xff]
    %v283 = vld [vmem:[#allocation2 + $0x150] sm:$0xff]
    %v284 = vld [vmem:[#allocation2 + $0x158] sm:$0xff]
    %v285 = vld [vmem:[#allocation2 + $0x160] sm:$0xff]
    %v286 = vld [vmem:[#allocation2 + $0x168] sm:$0xff]
    %v287 = vld [vmem:[#allocation2 + $0x170] sm:$0xff]
    %v288 = vld [vmem:[#allocation2 + $0x178] sm:$0xff]
    %v289 = vld [vmem:[#allocation2 + $0x180] sm:$0xff]
    %v290 = vld [vmem:[#allocation2 + $0x188] sm:$0xff]
    %v291 = vld [vmem:[#allocation2 + $0x190] sm:$0xff]
    %v292 = vld [vmem:[#allocation2 + $0x198] sm:$0xff]
    %v293 = vld [vmem:[#allocation2 + $0x1a0] sm:$0xff]
    %v294 = vld [vmem:[#allocation2 + $0x1a8] sm:$0xff]
    %v295 = vld [vmem:[#allocation2 + $0x1b0] sm:$0xff]
    %v296 = vld [vmem:[#allocation2 + $0x1b8] sm:$0xff]
    %v297 = vld [vmem:[#allocation2 + $0x1c0] sm:$0xff]
    %v298 = vld [vmem:[#allocation2 + $0x1c8] sm:$0xff]
    %v299 = vld [vmem:[#allocation2 + $0x1d0] sm:$0xff]
    %v300 = vld [vmem:[#allocation2 + $0x1d8] sm:$0xff]
    %v301 = vld [vmem:[#allocation2 + $0x1e0] sm:$0xff]
    %v302 = vld [vmem:[#allocation2 + $0x1e8] sm:$0xff]
    %v303 = vld [vmem:[#allocation2 + $0x1f0] sm:$0xff]
    %v304 = vld [vmem:[#allocation2 + $0x1f8] sm:$0xff]
    %305 = vmatprep.subr.mxu0 %v242
    %306 = vmatpush1.msra.mxu0 %v241
    %307 = vmatprep.subr.mxu0 %v246
    %308 = vmatpush1.msra.mxu0 %v245
    %309 = vmatprep.subr.mxu0 %v250
    %310 = vmatpush1.msra.mxu0 %v249
    %311 = vmatprep.subr.mxu0 %v254
    %312 = vmatpush1.msra.mxu0 %v253
    %313 = vmatprep.subr.mxu0 %v258
    %314 = vmatpush1.msra.mxu0 %v257
    %315 = vmatprep.subr.mxu0 %v262
    %316 = vmatpush1.msra.mxu0 %v261
    %317 = vmatprep.subr.mxu0 %v266
    %318 = vmatpush1.msra.mxu0 %v265
    %319 = vmatprep.subr.mxu0 %v270
    %320 = vmatpush1.msra.mxu0 %v269
    %321 = vmatprep.subr.mxu0 %v274
    %322 = vmatpush1.msra.mxu0 %v273
    %323 = vmatprep.subr.mxu0 %v278
    %324 = vmatpush1.msra.mxu0 %v277
    %325 = vmatprep.subr.mxu0 %v282
    %326 = vmatpush1.msra.mxu0 %v281
    %327 = vmatprep.subr.mxu0 %v286
    %328 = vmatpush1.msra.mxu0 %v285
    %329 = vmatprep.subr.mxu0 %v290
    %330 = vmatpush1.msra.mxu0 %v289
    %331 = vmatprep.subr.mxu0 %v294
    %332 = vmatpush1.msra.mxu0 %v293
    %333 = vmatprep.subr.mxu0 %v298
    %334 = vmatpush1.msra.mxu0 %v297
    %335 = vmatprep.subr.mxu0 %v302
    %336 = vmatpush1.msra.mxu0 %v301
    %337 = vmatprep.subr.mxu0 0.0
    %338 = vmatpush1.msra.mxu0 0.0
    %339 = vmatprep.subr.mxu0 0.0
    %340 = vmatpush1.msra.mxu0 0.0
    %341 = vmatprep.subr.mxu0 0.0
    %342 = vmatpush1.msra.mxu0 0.0
    %343 = vmatprep.subr.mxu0 0.0
    %344 = vmatpush1.msra.mxu0 0.0
    %345 = vmatprep.subr.mxu0 0.0
    %346 = vmatpush1.msra.mxu0 0.0
    %347 = vmatprep.subr.mxu0 0.0
    %348 = vmatpush1.msra.mxu0 0.0
    %349 = vmatprep.subr.mxu0 0.0
    %350 = vmatpush1.msra.mxu0 0.0
    %351 = vmatprep.subr.mxu0 0.0
    %352 = vmatpush1.msra.mxu0 0.0
    %353 = vmatprep.subr.mxu0 0.0
    %354 = vmatpush1.msra.mxu0 0.0
    %355 = vmatprep.subr.mxu0 0.0
    %356 = vmatpush1.msra.mxu0 0.0
    %357 = vmatprep.subr.mxu0 0.0
    %358 = vmatpush1.msra.mxu0 0.0
    %359 = vmatprep.subr.mxu0 0.0
    %360 = vmatpush1.msra.mxu0 0.0
    %361 = vmatprep.subr.mxu0 0.0
    %362 = vmatpush1.msra.mxu0 0.0
    %363 = vmatprep.subr.mxu0 0.0
    %364 = vmatpush1.msra.mxu0 0.0
    %365 = vmatprep.subr.mxu0 0.0
    %366 = vmatpush1.msra.mxu0 0.0
    %367 = vmatprep.subr.mxu0 0.0
    %368 = vmatpush1.msra.mxu0 0.0
    %369 = vmatprep.mubr.f32.mxu0 0.0
    %370 = vmatmul.mubr.f32.gmra.mrb[0].mxu0 0.0
    %v371 = vpop.f32.mrb[0].mxu0
    %v372 = vadd.f32 0.0, %v371
    %v373 = vpop.f32.mrb[0].mxu0
    %v374 = vadd.f32 0.0, %v373
    %375 = vdwg.mxu0
    %376 = vmatprep.subr.mxu0 %v244
    %377 = vmatpush1.msra.mxu0 %v243
    %378 = vmatprep.subr.mxu0 %v248
    %379 = vmatpush1.msra.mxu0 %v247
    %380 = vmatprep.subr.mxu0 %v252
    %381 = vmatpush1.msra.mxu0 %v251
    %382 = vmatprep.subr.mxu0 %v256
    %383 = vmatpush1.msra.mxu0 %v255
    %384 = vmatprep.subr.mxu0 %v260
    %385 = vmatpush1.msra.mxu0 %v259
    %386 = vmatprep.subr.mxu0 %v264
    %387 = vmatpush1.msra.mxu0 %v263
    %388 = vmatprep.subr.mxu0 %v268
    %389 = vmatpush1.msra.mxu0 %v267
    %390 = vmatprep.subr.mxu0 %v272
    %391 = vmatpush1.msra.mxu0 %v271
    %392 = vmatprep.subr.mxu0 %v276
    %393 = vmatpush1.msra.mxu0 %v275
    %394 = vmatprep.subr.mxu0 %v280
    %395 = vmatpush1.msra.mxu0 %v279
    %396 = vmatprep.subr.mxu0 %v284
    %397 = vmatpush1.msra.mxu0 %v283
    %398 = vmatprep.subr.mxu0 %v288
    %399 = vmatpush1.msra.mxu0 %v287
    %400 = vmatprep.subr.mxu0 %v292
    %401 = vmatpush1.msra.mxu0 %v291
    %402 = vmatprep.subr.mxu0 %v296
    %403 = vmatpush1.msra.mxu0 %v295
    %404 = vmatprep.subr.mxu0 %v300
    %405 = vmatpush1.msra.mxu0 %v299
    %406 = vmatprep.subr.mxu0 %v304
    %407 = vmatpush1.msra.mxu0 %v303
    %408 = vmatprep.subr.mxu0 0.0
    %409 = vmatpush1.msra.mxu0 0.0
    %410 = vmatprep.subr.mxu0 0.0
    %411 = vmatpush1.msra.mxu0 0.0
    %412 = vmatprep.subr.mxu0 0.0
    %413 = vmatpush1.msra.mxu0 0.0
    %414 = vmatprep.subr.mxu0 0.0
    %415 = vmatpush1.msra.mxu0 0.0
    %416 = vmatprep.subr.mxu0 0.0
    %417 = vmatpush1.msra.mxu0 0.0
    %418 = vmatprep.subr.mxu0 0.0
    %419 = vmatpush1.msra.mxu0 0.0
    %420 = vmatprep.subr.mxu0 0.0
    %421 = vmatpush1.msra.mxu0 0.0
    %422 = vmatprep.subr.mxu0 0.0
    %423 = vmatpush1.msra.mxu0 0.0
    %424 = vmatprep.subr.mxu0 0.0
    %425 = vmatpush1.msra.mxu0 0.0
    %426 = vmatprep.subr.mxu0 0.0
    %427 = vmatpush1.msra.mxu0 0.0
    %428 = vmatprep.subr.mxu0 0.0
    %429 = vmatpush1.msra.mxu0 0.0
    %430 = vmatprep.subr.mxu0 0.0
    %431 = vmatpush1.msra.mxu0 0.0
    %432 = vmatprep.subr.mxu0 0.0
    %433 = vmatpush1.msra.mxu0 0.0
    %434 = vmatprep.subr.mxu0 0.0
    %435 = vmatpush1.msra.mxu0 0.0
    %436 = vmatprep.subr.mxu0 0.0
    %437 = vmatpush1.msra.mxu0 0.0
    %438 = vmatprep.subr.mxu0 0.0
    %439 = vmatpush1.msra.mxu0 0.0
    %440 = vmatprep.mubr.f32.mxu0 0.0
    %441 = vmatmul.mubr.f32.gmra.mrb[0].mxu0 0.0
    %v442 = vpop.f32.mrb[0].mxu0
    %v443 = vadd.f32 0.0, %v442
    %v444 = vpop.f32.mrb[0].mxu0
    %v445 = vadd.f32 0.0, %v444
    %446 = vdwg.mxu0
    %v447 = vadd.f32 %v154, %v372
    %v448 = vadd.f32 %v156, %v374
    %v449 = vadd.f32 %v231, %v443
    %v450 = vadd.f32 %v233, %v445
    %v451 = vxor.u32 %v447, 2147483648
    %v452 = vmul.f32 %v451, 1.442695
    %v453 = vpow.pop %v452
    %v454 = vadd.f32 %v453, 1.0
    %v455 = vrcp.pop %v454
    %v456 = vmul.f32 1.0, %v455
    %v457 = vxor.u32 %v448, 2147483648
    %v458 = vmul.f32 %v457, 1.442695
    %v459 = vpow.pop %v458
    %v460 = vadd.f32 %v459, 1.0
    %v461 = vrcp.pop %v460
    %v462 = vmul.f32 1.0, %v461
    %v463 = vtanh.pop %v449
    %v464 = vxor.u32 %v450, 2147483648
    %v465 = vmul.f32 %v464, 1.442695
    %v466 = vpow.pop %v465
    %v467 = vadd.f32 %v466, 1.0
    %v468 = vrcp.pop %v467
    %v469 = vmul.f32 1.0, %v468
    %v470 = vmul.f32 %v462, 0.0
    %v471 = vmul.f32 %v456, %v463
    %v472 = vadd.f32 %v470, %v471
    %v473 = vtanh.pop %v472
    %v474 = vmul.f32 %v469, %v473
    %475 = vmatprep.subr.mxu0 %v242
    %476 = vmatpush1.msra.mxu0 %v241
    %477 = vmatprep.subr.mxu0 %v246
    %478 = vmatpush1.msra.mxu0 %v245
    %479 = vmatprep.subr.mxu0 %v250
    %480 = vmatpush1.msra.mxu0 %v249
    %481 = vmatprep.subr.mxu0 %v254
    %482 = vmatpush1.msra.mxu0 %v253
    %483 = vmatprep.subr.mxu0 %v258
    %484 = vmatpush1.msra.mxu0 %v257
    %485 = vmatprep.subr.mxu0 %v262
    %486 = vmatpush1.msra.mxu0 %v261
    %487 = vmatprep.subr.mxu0 %v266
    %488 = vmatpush1.msra.mxu0 %v265
    %489 = vmatprep.subr.mxu0 %v270
    %490 = vmatpush1.msra.mxu0 %v269
    %491 = vmatprep.subr.mxu0 %v274
    %492 = vmatpush1.msra.mxu0 %v273
    %493 = vmatprep.subr.mxu0 %v278
    %494 = vmatpush1.msra.mxu0 %v277
    %495 = vmatprep.subr.mxu0 %v282
    %496 = vmatpush1.msra.mxu0 %v281
    %497 = vmatprep.subr.mxu0 %v286
    %498 = vmatpush1.msra.mxu0 %v285
    %499 = vmatprep.subr.mxu0 %v290
    %500 = vmatpush1.msra.mxu0 %v289
    %501 = vmatprep.subr.mxu0 %v294
    %502 = vmatpush1.msra.mxu0 %v293
    %503 = vmatprep.subr.mxu0 %v298
    %504 = vmatpush1.msra.mxu0 %v297
    %505 = vmatprep.subr.mxu0 %v302
    %506 = vmatpush1.msra.mxu0 %v301
    %507 = vmatprep.subr.mxu0 0.0
    %508 = vmatpush1.msra.mxu0 0.0
    %509 = vmatprep.subr.mxu0 0.0
    %510 = vmatpush1.msra.mxu0 0.0
    %511 = vmatprep.subr.mxu0 0.0
    %512 = vmatpush1.msra.mxu0 0.0
    %513 = vmatprep.subr.mxu0 0.0
    %514 = vmatpush1.msra.mxu0 0.0
    %515 = vmatprep.subr.mxu0 0.0
    %516 = vmatpush1.msra.mxu0 0.0
    %517 = vmatprep.subr.mxu0 0.0
    %518 = vmatpush1.msra.mxu0 0.0
    %519 = vmatprep.subr.mxu0 0.0
    %520 = vmatpush1.msra.mxu0 0.0
    %521 = vmatprep.subr.mxu0 0.0
    %522 = vmatpush1.msra.mxu0 0.0
    %523 = vmatprep.subr.mxu0 0.0
    %524 = vmatpush1.msra.mxu0 0.0
    %525 = vmatprep.subr.mxu0 0.0
    %526 = vmatpush1.msra.mxu0 0.0
    %527 = vmatprep.subr.mxu0 0.0
    %528 = vmatpush1.msra.mxu0 0.0
    %529 = vmatprep.subr.mxu0 0.0
    %530 = vmatpush1.msra.mxu0 0.0
    %531 = vmatprep.subr.mxu0 0.0
    %532 = vmatpush1.msra.mxu0 0.0
    %533 = vmatprep.subr.mxu0 0.0
    %534 = vmatpush1.msra.mxu0 0.0
    %535 = vmatprep.subr.mxu0 0.0
    %536 = vmatpush1.msra.mxu0 0.0
    %537 = vmatprep.subr.mxu0 0.0
    %538 = vmatpush1.msra.mxu0 0.0
    %539 = vmatprep.mubr.f32.mxu0 0.0
    %540 = vmatmul.mubr.f32.gmra.mrb[0].mxu0 %v474
    %v541 = vpop.f32.mrb[0].mxu0
    %v542 = vadd.f32 0.0, %v541
    %v543 = vpop.f32.mrb[0].mxu0
    %v544 = vadd.f32 0.0, %v543
    %545 = vdwg.mxu0
    %546 = vmatprep.subr.mxu0 %v244
    %547 = vmatpush1.msra.mxu0 %v243
    %548 = vmatprep.subr.mxu0 %v248
    %549 = vmatpush1.msra.mxu0 %v247
    %550 = vmatprep.subr.mxu0 %v252
    %551 = vmatpush1.msra.mxu0 %v251
    %552 = vmatprep.subr.mxu0 %v256
    %553 = vmatpush1.msra.mxu0 %v255
    %554 = vmatprep.subr.mxu0 %v260
    %555 = vmatpush1.msra.mxu0 %v259
    %556 = vmatprep.subr.mxu0 %v264
    %557 = vmatpush1.msra.mxu0 %v263
    %558 = vmatprep.subr.mxu0 %v268
    %559 = vmatpush1.msra.mxu0 %v267
    %560 = vmatprep.subr.mxu0 %v272
    %561 = vmatpush1.msra.mxu0 %v271
    %562 = vmatprep.subr.mxu0 %v276
    %563 = vmatpush1.msra.mxu0 %v275
    %564 = vmatprep.subr.mxu0 %v280
    %565 = vmatpush1.msra.mxu0 %v279
    %566 = vmatprep.subr.mxu0 %v284
    %567 = vmatpush1.msra.mxu0 %v283
    %568 = vmatprep.subr.mxu0 %v288
    %569 = vmatpush1.msra.mxu0 %v287
    %570 = vmatprep.subr.mxu0 %v292
    %571 = vmatpush1.msra.mxu0 %v291
    %572 = vmatprep.subr.mxu0 %v296
    %573 = vmatpush1.msra.mxu0 %v295
    %574 = vmatprep.subr.mxu0 %v300
    %575 = vmatpush1.msra.mxu0 %v299
    %576 = vmatprep.subr.mxu0 %v304
    %577 = vmatpush1.msra.mxu0 %v303
    %578 = vmatprep.subr.mxu0 0.0
    %579 = vmatpush1.msra.mxu0 0.0
    %580 = vmatprep.subr.mxu0 0.0
    %581 = vmatpush1.msra.mxu0 0.0
    %582 = vmatprep.subr.mxu0 0.0
    %583 = vmatpush1.msra.mxu0 0.0
    %584 = vmatprep.subr.mxu0 0.0
    %585 = vmatpush1.msra.mxu0 0.0
    %586 = vmatprep.subr.mxu0 0.0
    %587 = vmatpush1.msra.mxu0 0.0
    %588 = vmatprep.subr.mxu0 0.0
    %589 = vmatpush1.msra.mxu0 0.0
    %590 = vmatprep.subr.mxu0 0.0
    %591 = vmatpush1.msra.mxu0 0.0
    %592 = vmatprep.subr.mxu0 0.0
    %593 = vmatpush1.msra.mxu0 0.0
    %594 = vmatprep.subr.mxu0 0.0
    %595 = vmatpush1.msra.mxu0 0.0
    %596 = vmatprep.subr.mxu0 0.0
    %597 = vmatpush1.msra.mxu0 0.0
    %598 = vmatprep.subr.mxu0 0.0
    %599 = vmatpush1.msra.mxu0 0.0
    %600 = vmatprep.subr.mxu0 0.0
    %601 = vmatpush1.msra.mxu0 0.0
    %602 = vmatprep.subr.mxu0 0.0
    %603 = vmatpush1.msra.mxu0 0.0
    %604 = vmatprep.subr.mxu0 0.0
    %605 = vmatpush1.msra.mxu0 0.0
    %606 = vmatprep.subr.mxu0 0.0
    %607 = vmatpush1.msra.mxu0 0.0
    %608 = vmatprep.subr.mxu0 0.0
    %609 = vmatpush1.msra.mxu0 0.0
    %610 = vmatprep.mubr.f32.mxu0 0.0
    %611 = vmatmul.mubr.f32.gmra.mrb[0].mxu0 %v474
    %v612 = vpop.f32.mrb[0].mxu0
    %v613 = vadd.f32 0.0, %v612
    %v614 = vpop.f32.mrb[0].mxu0
    %v615 = vadd.f32 0.0, %v614
    %616 = vdwg.mxu0
    %v621 = vrot.slane %v542, 6
    %v622 = vrot.slane %v544, 6
    %v623 = vrot.slane %v613, 6
    %v624 = vrot.slane %v615, 6
    %v629 = vadd.f32 %v154, %v621
    %v630 = vadd.f32 %v156, %v622
    %v631 = vadd.f32 %v231, %v623
    %v632 = vadd.f32 %v233, %v624
    %v633 = vxor.u32 %v629, 2147483648
    %v634 = vmul.f32 %v633, 1.442695
    %v635 = vpow.pop %v634
    %v636 = vadd.f32 %v635, 1.0
    %v637 = vrcp.pop %v636
    %v638 = vmul.f32 1.0, %v637
    %v639 = vxor.u32 %v630, 2147483648
    %v640 = vmul.f32 %v639, 1.442695
    %v641 = vpow.pop %v640
    %v642 = vadd.f32 %v641, 1.0
    %v643 = vrcp.pop %v642
    %v644 = vmul.f32 1.0, %v643
    %v645 = vtanh.pop %v631
    %v646 = vxor.u32 %v632, 2147483648
    %v647 = vmul.f32 %v646, 1.442695
    %v648 = vpow.pop %v647
    %v649 = vadd.f32 %v648, 1.0
    %v650 = vrcp.pop %v649
    %v651 = vmul.f32 1.0, %v650
    %v653 = vrot.slane %v472, 6
    %v655 = vmul.f32 %v644, %v653
    %v656 = vmul.f32 %v638, %v645
    %v657 = vadd.f32 %v655, %v656
    %v658 = vtanh.pop %v657
    %v659 = vmul.f32 %v651, %v658
    %v661 = vrot.slane %v659, 2
    %663 = vmatprep.subr.mxu0 %v242
    %664 = vmatpush1.msra.mxu0 %v241
    %665 = vmatprep.subr.mxu0 %v246
    %666 = vmatpush1.msra.mxu0 %v245
    %667 = vmatprep.subr.mxu0 %v250
    %668 = vmatpush1.msra.mxu0 %v249
    %669 = vmatprep.subr.mxu0 %v254
    %670 = vmatpush1.msra.mxu0 %v253
    %671 = vmatprep.subr.mxu0 %v258
    %672 = vmatpush1.msra.mxu0 %v257
    %673 = vmatprep.subr.mxu0 %v262
    %674 = vmatpush1.msra.mxu0 %v261
    %675 = vmatprep.subr.mxu0 %v266
    %676 = vmatpush1.msra.mxu0 %v265
    %677 = vmatprep.subr.mxu0 %v270
    %678 = vmatpush1.msra.mxu0 %v269
    %679 = vmatprep.subr.mxu0 %v274
    %680 = vmatpush1.msra.mxu0 %v273
    %681 = vmatprep.subr.mxu0 %v278
    %682 = vmatpush1.msra.mxu0 %v277
    %683 = vmatprep.subr.mxu0 %v282
    %684 = vmatpush1.msra.mxu0 %v281
    %685 = vmatprep.subr.mxu0 %v286
    %686 = vmatpush1.msra.mxu0 %v285
    %687 = vmatprep.subr.mxu0 %v290
    %688 = vmatpush1.msra.mxu0 %v289
    %689 = vmatprep.subr.mxu0 %v294
    %690 = vmatpush1.msra.mxu0 %v293
    %691 = vmatprep.subr.mxu0 %v298
    %692 = vmatpush1.msra.mxu0 %v297
    %693 = vmatprep.subr.mxu0 %v302
    %694 = vmatpush1.msra.mxu0 %v301
    %695 = vmatprep.subr.mxu0 0.0
    %696 = vmatpush1.msra.mxu0 0.0
    %697 = vmatprep.subr.mxu0 0.0
    %698 = vmatpush1.msra.mxu0 0.0
    %699 = vmatprep.subr.mxu0 0.0
    %700 = vmatpush1.msra.mxu0 0.0
    %701 = vmatprep.subr.mxu0 0.0
    %702 = vmatpush1.msra.mxu0 0.0
    %703 = vmatprep.subr.mxu0 0.0
    %704 = vmatpush1.msra.mxu0 0.0
    %705 = vmatprep.subr.mxu0 0.0
    %706 = vmatpush1.msra.mxu0 0.0
    %707 = vmatprep.subr.mxu0 0.0
    %708 = vmatpush1.msra.mxu0 0.0
    %709 = vmatprep.subr.mxu0 0.0
    %710 = vmatpush1.msra.mxu0 0.0
    %711 = vmatprep.subr.mxu0 0.0
    %712 = vmatpush1.msra.mxu0 0.0
    %713 = vmatprep.subr.mxu0 0.0
    %714 = vmatpush1.msra.mxu0 0.0
    %715 = vmatprep.subr.mxu0 0.0
    %716 = vmatpush1.msra.mxu0 0.0
    %717 = vmatprep.subr.mxu0 0.0
    %718 = vmatpush1.msra.mxu0 0.0
    %719 = vmatprep.subr.mxu0 0.0
    %720 = vmatpush1.msra.mxu0 0.0
    %721 = vmatprep.subr.mxu0 0.0
    %722 = vmatpush1.msra.mxu0 0.0
    %723 = vmatprep.subr.mxu0 0.0
    %724 = vmatpush1.msra.mxu0 0.0
    %725 = vmatprep.subr.mxu0 0.0
    %726 = vmatpush1.msra.mxu0 0.0
    %727 = vmatprep.mubr.f32.mxu0 0.0
    %728 = vmatmul.mubr.f32.gmra.mrb[0].mxu0 %v661
    %v729 = vpop.f32.mrb[0].mxu0
    %v730 = vadd.f32 0.0, %v729
    %v731 = vpop.f32.mrb[0].mxu0
    %v732 = vadd.f32 0.0, %v731
    %733 = vdwg.mxu0
    %734 = vmatprep.subr.mxu0 %v244
    %735 = vmatpush1.msra.mxu0 %v243
    %736 = vmatprep.subr.mxu0 %v248
    %737 = vmatpush1.msra.mxu0 %v247
    %738 = vmatprep.subr.mxu0 %v252
    %739 = vmatpush1.msra.mxu0 %v251
    %740 = vmatprep.subr.mxu0 %v256
    %741 = vmatpush1.msra.mxu0 %v255
    %742 = vmatprep.subr.mxu0 %v260
    %743 = vmatpush1.msra.mxu0 %v259
    %744 = vmatprep.subr.mxu0 %v264
    %745 = vmatpush1.msra.mxu0 %v263
    %746 = vmatprep.subr.mxu0 %v268
    %747 = vmatpush1.msra.mxu0 %v267
    %748 = vmatprep.subr.mxu0 %v272
    %749 = vmatpush1.msra.mxu0 %v271
    %750 = vmatprep.subr.mxu0 %v276
    %751 = vmatpush1.msra.mxu0 %v275
    %752 = vmatprep.subr.mxu0 %v280
    %753 = vmatpush1.msra.mxu0 %v279
    %754 = vmatprep.subr.mxu0 %v284
    %755 = vmatpush1.msra.mxu0 %v283
    %756 = vmatprep.subr.mxu0 %v288
    %757 = vmatpush1.msra.mxu0 %v287
    %758 = vmatprep.subr.mxu0 %v292
    %759 = vmatpush1.msra.mxu0 %v291
    %760 = vmatprep.subr.mxu0 %v296
    %761 = vmatpush1.msra.mxu0 %v295
    %762 = vmatprep.subr.mxu0 %v300
    %763 = vmatpush1.msra.mxu0 %v299
    %764 = vmatprep.subr.mxu0 %v304
    %765 = vmatpush1.msra.mxu0 %v303
    %766 = vmatprep.subr.mxu0 0.0
    %767 = vmatpush1.msra.mxu0 0.0
    %768 = vmatprep.subr.mxu0 0.0
    %769 = vmatpush1.msra.mxu0 0.0
    %770 = vmatprep.subr.mxu0 0.0
    %771 = vmatpush1.msra.mxu0 0.0
    %772 = vmatprep.subr.mxu0 0.0
    %773 = vmatpush1.msra.mxu0 0.0
    %774 = vmatprep.subr.mxu0 0.0
    %775 = vmatpush1.msra.mxu0 0.0
    %776 = vmatprep.subr.mxu0 0.0
    %777 = vmatpush1.msra.mxu0 0.0
    %778 = vmatprep.subr.mxu0 0.0
    %779 = vmatpush1.msra.mxu0 0.0
    %780 = vmatprep.subr.mxu0 0.0
    %781 = vmatpush1.msra.mxu0 0.0
    %782 = vmatprep.subr.mxu0 0.0
    %783 = vmatpush1.msra.mxu0 0.0
    %784 = vmatprep.subr.mxu0 0.0
    %785 = vmatpush1.msra.mxu0 0.0
    %786 = vmatprep.subr.mxu0 0.0
    %787 = vmatpush1.msra.mxu0 0.0
    %788 = vmatprep.subr.mxu0 0.0
    %789 = vmatpush1.msra.mxu0 0.0
    %790 = vmatprep.subr.mxu0 0.0
    %791 = vmatpush1.msra.mxu0 0.0
    %792 = vmatprep.subr.mxu0 0.0
    %793 = vmatpush1.msra.mxu0 0.0
    %794 = vmatprep.subr.mxu0 0.0
    %795 = vmatpush1.msra.mxu0 0.0
    %796 = vmatprep.subr.mxu0 0.0
    %797 = vmatpush1.msra.mxu0 0.0
    %798 = vmatprep.mubr.f32.mxu0 0.0
    %799 = vmatmul.mubr.f32.gmra.mrb[0].mxu0 %v661
    %v800 = vpop.f32.mrb[0].mxu0
    %v801 = vadd.f32 0.0, %v800
    %v802 = vpop.f32.mrb[0].mxu0
    %v803 = vadd.f32 0.0, %v802
    %804 = vdwg.mxu0
    %v809 = vrot.slane %v730, 4
    %v810 = vrot.slane %v732, 4
    %v811 = vrot.slane %v801, 4
    %v812 = vrot.slane %v803, 4
    %v817 = vadd.f32 %v154, %v809
    %v818 = vadd.f32 %v156, %v810
    %v819 = vadd.f32 %v231, %v811
    %v820 = vadd.f32 %v233, %v812
    %v821 = vxor.u32 %v817, 2147483648
    %v822 = vmul.f32 %v821, 1.442695
    %v823 = vpow.pop %v822
    %v824 = vadd.f32 %v823, 1.0
    %v825 = vrcp.pop %v824
    %v826 = vmul.f32 1.0, %v825
    %v827 = vxor.u32 %v818, 2147483648
    %v828 = vmul.f32 %v827, 1.442695
    %v829 = vpow.pop %v828
    %v830 = vadd.f32 %v829, 1.0
    %v831 = vrcp.pop %v830
    %v832 = vmul.f32 1.0, %v831
    %v833 = vtanh.pop %v819
    %v834 = vxor.u32 %v820, 2147483648
    %v835 = vmul.f32 %v834, 1.442695
    %v836 = vpow.pop %v835
    %v837 = vadd.f32 %v836, 1.0
    %v838 = vrcp.pop %v837
    %v839 = vmul.f32 1.0, %v838
    %v841 = vrot.slane %v657, 6
    %v843 = vmul.f32 %v832, %v841
    %v844 = vmul.f32 %v826, %v833
    %v845 = vadd.f32 %v843, %v844
    %v846 = vtanh.pop %v845
    %v847 = vmul.f32 %v839, %v846
    %v849 = vrot.slane %v847, 4
    %851 = vmatprep.subr.mxu0 %v242
    %852 = vmatpush1.msra.mxu0 %v241
    %853 = vmatprep.subr.mxu0 %v246
    %854 = vmatpush1.msra.mxu0 %v245
    %855 = vmatprep.subr.mxu0 %v250
    %856 = vmatpush1.msra.mxu0 %v249
    %857 = vmatprep.subr.mxu0 %v254
    %858 = vmatpush1.msra.mxu0 %v253
    %859 = vmatprep.subr.mxu0 %v258
    %860 = vmatpush1.msra.mxu0 %v257
    %861 = vmatprep.subr.mxu0 %v262
    %862 = vmatpush1.msra.mxu0 %v261
    %863 = vmatprep.subr.mxu0 %v266
    %864 = vmatpush1.msra.mxu0 %v265
    %865 = vmatprep.subr.mxu0 %v270
    %866 = vmatpush1.msra.mxu0 %v269
    %867 = vmatprep.subr.mxu0 %v274
    %868 = vmatpush1.msra.mxu0 %v273
    %869 = vmatprep.subr.mxu0 %v278
    %870 = vmatpush1.msra.mxu0 %v277
    %871 = vmatprep.subr.mxu0 %v282
    %872 = vmatpush1.msra.mxu0 %v281
    %873 = vmatprep.subr.mxu0 %v286
    %874 = vmatpush1.msra.mxu0 %v285
    %875 = vmatprep.subr.mxu0 %v290
    %876 = vmatpush1.msra.mxu0 %v289
    %877 = vmatprep.subr.mxu0 %v294
    %878 = vmatpush1.msra.mxu0 %v293
    %879 = vmatprep.subr.mxu0 %v298
    %880 = vmatpush1.msra.mxu0 %v297
    %881 = vmatprep.subr.mxu0 %v302
    %882 = vmatpush1.msra.mxu0 %v301
    %883 = vmatprep.subr.mxu0 0.0
    %884 = vmatpush1.msra.mxu0 0.0
    %885 = vmatprep.subr.mxu0 0.0
    %886 = vmatpush1.msra.mxu0 0.0
    %887 = vmatprep.subr.mxu0 0.0
    %888 = vmatpush1.msra.mxu0 0.0
    %889 = vmatprep.subr.mxu0 0.0
    %890 = vmatpush1.msra.mxu0 0.0
    %891 = vmatprep.subr.mxu0 0.0
    %892 = vmatpush1.msra.mxu0 0.0
    %893 = vmatprep.subr.mxu0 0.0
    %894 = vmatpush1.msra.mxu0 0.0
    %895 = vmatprep.subr.mxu0 0.0
    %896 = vmatpush1.msra.mxu0 0.0
    %897 = vmatprep.subr.mxu0 0.0
    %898 = vmatpush1.msra.mxu0 0.0
    %899 = vmatprep.subr.mxu0 0.0
    %900 = vmatpush1.msra.mxu0 0.0
    %901 = vmatprep.subr.mxu0 0.0
    %902 = vmatpush1.msra.mxu0 0.0
    %903 = vmatprep.subr.mxu0 0.0
    %904 = vmatpush1.msra.mxu0 0.0
    %905 = vmatprep.subr.mxu0 0.0
    %906 = vmatpush1.msra.mxu0 0.0
    %907 = vmatprep.subr.mxu0 0.0
    %908 = vmatpush1.msra.mxu0 0.0
    %909 = vmatprep.subr.mxu0 0.0
    %910 = vmatpush1.msra.mxu0 0.0
    %911 = vmatprep.subr.mxu0 0.0
    %912 = vmatpush1.msra.mxu0 0.0
    %913 = vmatprep.subr.mxu0 0.0
    %914 = vmatpush1.msra.mxu0 0.0
    %915 = vmatprep.mubr.f32.mxu0 0.0
    %916 = vmatmul.mubr.f32.gmra.mrb[0].mxu0 %v849
    %v917 = vpop.f32.mrb[0].mxu0
    %v918 = vadd.f32 0.0, %v917
    %v919 = vpop.f32.mrb[0].mxu0
    %v920 = vadd.f32 0.0, %v919
    %921 = vdwg.mxu0
    %922 = vmatprep.subr.mxu0 %v244
    %923 = vmatpush1.msra.mxu0 %v243
    %924 = vmatprep.subr.mxu0 %v248
    %925 = vmatpush1.msra.mxu0 %v247
    %926 = vmatprep.subr.mxu0 %v252
    %927 = vmatpush1.msra.mxu0 %v251
    %928 = vmatprep.subr.mxu0 %v256
    %929 = vmatpush1.msra.mxu0 %v255
    %930 = vmatprep.subr.mxu0 %v260
    %931 = vmatpush1.msra.mxu0 %v259
    %932 = vmatprep.subr.mxu0 %v264
    %933 = vmatpush1.msra.mxu0 %v263
    %934 = vmatprep.subr.mxu0 %v268
    %935 = vmatpush1.msra.mxu0 %v267
    %936 = vmatprep.subr.mxu0 %v272
    %937 = vmatpush1.msra.mxu0 %v271
    %938 = vmatprep.subr.mxu0 %v276
    %939 = vmatpush1.msra.mxu0 %v275
    %940 = vmatprep.subr.mxu0 %v280
    %941 = vmatpush1.msra.mxu0 %v279
    %942 = vmatprep.subr.mxu0 %v284
    %943 = vmatpush1.msra.mxu0 %v283
    %944 = vmatprep.subr.mxu0 %v288
    %945 = vmatpush1.msra.mxu0 %v287
    %946 = vmatprep.subr.mxu0 %v292
    %947 = vmatpush1.msra.mxu0 %v291
    %948 = vmatprep.subr.mxu0 %v296
    %949 = vmatpush1.msra.mxu0 %v295
    %950 = vmatprep.subr.mxu0 %v300
    %951 = vmatpush1.msra.mxu0 %v299
    %952 = vmatprep.subr.mxu0 %v304
    %953 = vmatpush1.msra.mxu0 %v303
    %954 = vmatprep.subr.mxu0 0.0
    %955 = vmatpush1.msra.mxu0 0.0
    %956 = vmatprep.subr.mxu0 0.0
    %957 = vmatpush1.msra.mxu0 0.0
    %958 = vmatprep.subr.mxu0 0.0
    %959 = vmatpush1.msra.mxu0 0.0
    %960 = vmatprep.subr.mxu0 0.0
    %961 = vmatpush1.msra.mxu0 0.0
    %962 = vmatprep.subr.mxu0 0.0
    %963 = vmatpush1.msra.mxu0 0.0
    %964 = vmatprep.subr.mxu0 0.0
    %965 = vmatpush1.msra.mxu0 0.0
    %966 = vmatprep.subr.mxu0 0.0
    %967 = vmatpush1.msra.mxu0 0.0
    %968 = vmatprep.subr.mxu0 0.0
    %969 = vmatpush1.msra.mxu0 0.0
    %970 = vmatprep.subr.mxu0 0.0
    %971 = vmatpush1.msra.mxu0 0.0
    %972 = vmatprep.subr.mxu0 0.0
    %973 = vmatpush1.msra.mxu0 0.0
    %974 = vmatprep.subr.mxu0 0.0
    %975 = vmatpush1.msra.mxu0 0.0
    %976 = vmatprep.subr.mxu0 0.0
    %977 = vmatpush1.msra.mxu0 0.0
    %978 = vmatprep.subr.mxu0 0.0
    %979 = vmatpush1.msra.mxu0 0.0
    %980 = vmatprep.subr.mxu0 0.0
    %981 = vmatpush1.msra.mxu0 0.0
    %982 = vmatprep.subr.mxu0 0.0
    %983 = vmatpush1.msra.mxu0 0.0
    %984 = vmatprep.subr.mxu0 0.0
    %985 = vmatpush1.msra.mxu0 0.0
    %986 = vmatprep.mubr.f32.mxu0 0.0
    %987 = vmatmul.mubr.f32.gmra.mrb[0].mxu0 %v849
    %v988 = vpop.f32.mrb[0].mxu0
    %v989 = vadd.f32 0.0, %v988
    %v990 = vpop.f32.mrb[0].mxu0
    %v991 = vadd.f32 0.0, %v990
    %992 = vdwg.mxu0
    %v997 = vrot.slane %v918, 2
    %v998 = vrot.slane %v920, 2
    %v999 = vrot.slane %v989, 2
    %v1000 = vrot.slane %v991, 2
    %v1005 = vadd.f32 %v154, %v997
    %v1006 = vadd.f32 %v156, %v998
    %v1007 = vadd.f32 %v231, %v999
    %v1008 = vadd.f32 %v233, %v1000
    %v1009 = vxor.u32 %v1005, 2147483648
    %v1010 = vmul.f32 %v1009, 1.442695
    %v1011 = vpow.pop %v1010
    %v1012 = vadd.f32 %v1011, 1.0
    %v1013 = vrcp.pop %v1012
    %v1014 = vmul.f32 1.0, %v1013
    %v1015 = vxor.u32 %v1006, 2147483648
    %v1016 = vmul.f32 %v1015, 1.442695
    %v1017 = vpow.pop %v1016
    %v1018 = vadd.f32 %v1017, 1.0
    %v1019 = vrcp.pop %v1018
    %v1020 = vmul.f32 1.0, %v1019
    %v1021 = vtanh.pop %v1007
    %v1022 = vxor.u32 %v1008, 2147483648
    %v1023 = vmul.f32 %v1022, 1.442695
    %v1024 = vpow.pop %v1023
    %v1025 = vadd.f32 %v1024, 1.0
    %v1026 = vrcp.pop %v1025
    %v1027 = vmul.f32 1.0, %v1026
    %v1029 = vrot.slane %v845, 6
    %v1031 = vmul.f32 %v1020, %v1029
    %v1032 = vmul.f32 %v1014, %v1021
    %v1033 = vadd.f32 %v1031, %v1032
    %v1034 = vtanh.pop %v1033
    %v1035 = vmul.f32 %v1027, %v1034
    %v1037 = vrot.slane %v1035, 6
    %1039 = vmatprep.subr.mxu0 %v242
    %1040 = vmatpush1.msra.mxu0 %v241
    %1041 = vmatprep.subr.mxu0 %v246
    %1042 = vmatpush1.msra.mxu0 %v245
    %1043 = vmatprep.subr.mxu0 %v250
    %1044 = vmatpush1.msra.mxu0 %v249
    %1045 = vmatprep.subr.mxu0 %v254
    %1046 = vmatpush1.msra.mxu0 %v253
    %1047 = vmatprep.subr.mxu0 %v258
    %1048 = vmatpush1.msra.mxu0 %v257
    %1049 = vmatprep.subr.mxu0 %v262
    %1050 = vmatpush1.msra.mxu0 %v261
    %1051 = vmatprep.subr.mxu0 %v266
    %1052 = vmatpush1.msra.mxu0 %v265
    %1053 = vmatprep.subr.mxu0 %v270
    %1054 = vmatpush1.msra.mxu0 %v269
    %1055 = vmatprep.subr.mxu0 %v274
    %1056 = vmatpush1.msra.mxu0 %v273
    %1057 = vmatprep.subr.mxu0 %v278
    %1058 = vmatpush1.msra.mxu0 %v277
    %1059 = vmatprep.subr.mxu0 %v282
    %1060 = vmatpush1.msra.mxu0 %v281
    %1061 = vmatprep.subr.mxu0 %v286
    %1062 = vmatpush1.msra.mxu0 %v285
    %1063 = vmatprep.subr.mxu0 %v290
    %1064 = vmatpush1.msra.mxu0 %v289
    %1065 = vmatprep.subr.mxu0 %v294
    %1066 = vmatpush1.msra.mxu0 %v293
    %1067 = vmatprep.subr.mxu0 %v298
    %1068 = vmatpush1.msra.mxu0 %v297
    %1069 = vmatprep.subr.mxu0 %v302
    %1070 = vmatpush1.msra.mxu0 %v301
    %1071 = vmatprep.subr.mxu0 0.0
    %1072 = vmatpush1.msra.mxu0 0.0
    %1073 = vmatprep.subr.mxu0 0.0
    %1074 = vmatpush1.msra.mxu0 0.0
    %1075 = vmatprep.subr.mxu0 0.0
    %1076 = vmatpush1.msra.mxu0 0.0
    %1077 = vmatprep.subr.mxu0 0.0
    %1078 = vmatpush1.msra.mxu0 0.0
    %1079 = vmatprep.subr.mxu0 0.0
    %1080 = vmatpush1.msra.mxu0 0.0
    %1081 = vmatprep.subr.mxu0 0.0
    %1082 = vmatpush1.msra.mxu0 0.0
    %1083 = vmatprep.subr.mxu0 0.0
    %1084 = vmatpush1.msra.mxu0 0.0
    %1085 = vmatprep.subr.mxu0 0.0
    %1086 = vmatpush1.msra.mxu0 0.0
    %1087 = vmatprep.subr.mxu0 0.0
    %1088 = vmatpush1.msra.mxu0 0.0
    %1089 = vmatprep.subr.mxu0 0.0
    %1090 = vmatpush1.msra.mxu0 0.0
    %1091 = vmatprep.subr.mxu0 0.0
    %1092 = vmatpush1.msra.mxu0 0.0
    %1093 = vmatprep.subr.mxu0 0.0
    %1094 = vmatpush1.msra.mxu0 0.0
    %1095 = vmatprep.subr.mxu0 0.0
    %1096 = vmatpush1.msra.mxu0 0.0
    %1097 = vmatprep.subr.mxu0 0.0
    %1098 = vmatpush1.msra.mxu0 0.0
    %1099 = vmatprep.subr.mxu0 0.0
    %1100 = vmatpush1.msra.mxu0 0.0
    %1101 = vmatprep.subr.mxu0 0.0
    %1102 = vmatpush1.msra.mxu0 0.0
    %1103 = vmatprep.mubr.f32.mxu0 0.0
    %1104 = vmatmul.mubr.f32.gmra.mrb[0].mxu0 %v1037
    %v1105 = vpop.f32.mrb[0].mxu0
    %v1106 = vadd.f32 0.0, %v1105
    %v1107 = vpop.f32.mrb[0].mxu0
    %v1108 = vadd.f32 0.0, %v1107
    %1109 = vdwg.mxu0
    %1110 = vmatprep.subr.mxu0 %v244
    %1111 = vmatpush1.msra.mxu0 %v243
    %1112 = vmatprep.subr.mxu0 %v248
    %1113 = vmatpush1.msra.mxu0 %v247
    %1114 = vmatprep.subr.mxu0 %v252
    %1115 = vmatpush1.msra.mxu0 %v251
    %1116 = vmatprep.subr.mxu0 %v256
    %1117 = vmatpush1.msra.mxu0 %v255
    %1118 = vmatprep.subr.mxu0 %v260
    %1119 = vmatpush1.msra.mxu0 %v259
    %1120 = vmatprep.subr.mxu0 %v264
    %1121 = vmatpush1.msra.mxu0 %v263
    %1122 = vmatprep.subr.mxu0 %v268
    %1123 = vmatpush1.msra.mxu0 %v267
    %1124 = vmatprep.subr.mxu0 %v272
    %1125 = vmatpush1.msra.mxu0 %v271
    %1126 = vmatprep.subr.mxu0 %v276
    %1127 = vmatpush1.msra.mxu0 %v275
    %1128 = vmatprep.subr.mxu0 %v280
    %1129 = vmatpush1.msra.mxu0 %v279
    %1130 = vmatprep.subr.mxu0 %v284
    %1131 = vmatpush1.msra.mxu0 %v283
    %1132 = vmatprep.subr.mxu0 %v288
    %1133 = vmatpush1.msra.mxu0 %v287
    %1134 = vmatprep.subr.mxu0 %v292
    %1135 = vmatpush1.msra.mxu0 %v291
    %1136 = vmatprep.subr.mxu0 %v296
    %1137 = vmatpush1.msra.mxu0 %v295
    %1138 = vmatprep.subr.mxu0 %v300
    %1139 = vmatpush1.msra.mxu0 %v299
    %1140 = vmatprep.subr.mxu0 %v304
    %1141 = vmatpush1.msra.mxu0 %v303
    %1142 = vmatprep.subr.mxu0 0.0
    %1143 = vmatpush1.msra.mxu0 0.0
    %1144 = vmatprep.subr.mxu0 0.0
    %1145 = vmatpush1.msra.mxu0 0.0
    %1146 = vmatprep.subr.mxu0 0.0
    %1147 = vmatpush1.msra.mxu0 0.0
    %1148 = vmatprep.subr.mxu0 0.0
    %1149 = vmatpush1.msra.mxu0 0.0
    %1150 = vmatprep.subr.mxu0 0.0
    %1151 = vmatpush1.msra.mxu0 0.0
    %1152 = vmatprep.subr.mxu0 0.0
    %1153 = vmatpush1.msra.mxu0 0.0
    %1154 = vmatprep.subr.mxu0 0.0
    %1155 = vmatpush1.msra.mxu0 0.0
    %1156 = vmatprep.subr.mxu0 0.0
    %1157 = vmatpush1.msra.mxu0 0.0
    %1158 = vmatprep.subr.mxu0 0.0
    %1159 = vmatpush1.msra.mxu0 0.0
    %1160 = vmatprep.subr.mxu0 0.0
    %1161 = vmatpush1.msra.mxu0 0.0
    %1162 = vmatprep.subr.mxu0 0.0
    %1163 = vmatpush1.msra.mxu0 0.0
    %1164 = vmatprep.subr.mxu0 0.0
    %1165 = vmatpush1.msra.mxu0 0.0
    %1166 = vmatprep.subr.mxu0 0.0
    %1167 = vmatpush1.msra.mxu0 0.0
    %1168 = vmatprep.subr.mxu0 0.0
    %1169 = vmatpush1.msra.mxu0 0.0
    %1170 = vmatprep.subr.mxu0 0.0
    %1171 = vmatpush1.msra.mxu0 0.0
    %1172 = vmatprep.subr.mxu0 0.0
    %1173 = vmatpush1.msra.mxu0 0.0
    %1174 = vmatprep.mubr.f32.mxu0 0.0
    %1175 = vmatmul.mubr.f32.gmra.mrb[0].mxu0 %v1037
    %v1176 = vpop.f32.mrb[0].mxu0
    %v1177 = vadd.f32 0.0, %v1176
    %v1178 = vpop.f32.mrb[0].mxu0
    %v1179 = vadd.f32 0.0, %v1178
    %1180 = vdwg.mxu0
    %v1181 = vadd.f32 %v160, %v1106
    %v1182 = vadd.f32 %v162, %v1108
    %v1183 = vadd.f32 %v237, %v1177
    %v1184 = vadd.f32 %v239, %v1179
    %v1185 = vxor.u32 %v1181, 2147483648
    %v1186 = vmul.f32 %v1185, 1.442695
    %v1187 = vpow.pop %v1186
    %v1188 = vadd.f32 %v1187, 1.0
    %v1189 = vrcp.pop %v1188
    %v1190 = vmul.f32 1.0, %v1189
    %v1191 = vxor.u32 %v1182, 2147483648
    %v1192 = vmul.f32 %v1191, 1.442695
    %v1193 = vpow.pop %v1192
    %v1194 = vadd.f32 %v1193, 1.0
    %v1195 = vrcp.pop %v1194
    %v1196 = vmul.f32 1.0, %v1195
    %v1197 = vtanh.pop %v1183
    %v1198 = vxor.u32 %v1184, 2147483648
    %v1199 = vmul.f32 %v1198, 1.442695
    %v1200 = vpow.pop %v1199
    %v1201 = vadd.f32 %v1200, 1.0
    %v1202 = vrcp.pop %v1201
    %v1203 = vmul.f32 1.0, %v1202
    %v1205 = vrot.slane %v1033, 6
    %v1207 = vmul.f32 %v1196, %v1205
    %v1208 = vmul.f32 %v1190, %v1197
    %v1209 = vadd.f32 %v1207, %v1208
    %v1210 = vtanh.pop %v1209
    %v1211 = vmul.f32 %v1203, %v1210
    %1212 = vmatprep.subr.mxu0 %v242
    %1213 = vmatpush1.msra.mxu0 %v241
    %1214 = vmatprep.subr.mxu0 %v246
    %1215 = vmatpush1.msra.mxu0 %v245
    %1216 = vmatprep.subr.mxu0 %v250
    %1217 = vmatpush1.msra.mxu0 %v249
    %1218 = vmatprep.subr.mxu0 %v254
    %1219 = vmatpush1.msra.mxu0 %v253
    %1220 = vmatprep.subr.mxu0 %v258
    %1221 = vmatpush1.msra.mxu0 %v257
    %1222 = vmatprep.subr.mxu0 %v262
    %1223 = vmatpush1.msra.mxu0 %v261
    %1224 = vmatprep.subr.mxu0 %v266
    %1225 = vmatpush1.msra.mxu0 %v265
    %1226 = vmatprep.subr.mxu0 %v270
    %1227 = vmatpush1.msra.mxu0 %v269
    %1228 = vmatprep.subr.mxu0 %v274
    %1229 = vmatpush1.msra.mxu0 %v273
    %1230 = vmatprep.subr.mxu0 %v278
    %1231 = vmatpush1.msra.mxu0 %v277
    %1232 = vmatprep.subr.mxu0 %v282
    %1233 = vmatpush1.msra.mxu0 %v281
    %1234 = vmatprep.subr.mxu0 %v286
    %1235 = vmatpush1.msra.mxu0 %v285
    %1236 = vmatprep.subr.mxu0 %v290
    %1237 = vmatpush1.msra.mxu0 %v289
    %1238 = vmatprep.subr.mxu0 %v294
    %1239 = vmatpush1.msra.mxu0 %v293
    %1240 = vmatprep.subr.mxu0 %v298
    %1241 = vmatpush1.msra.mxu0 %v297
    %1242 = vmatprep.subr.mxu0 %v302
    %1243 = vmatpush1.msra.mxu0 %v301
    %1244 = vmatprep.subr.mxu0 0.0
    %1245 = vmatpush1.msra.mxu0 0.0
    %1246 = vmatprep.subr.mxu0 0.0
    %1247 = vmatpush1.msra.mxu0 0.0
    %1248 = vmatprep.subr.mxu0 0.0
    %1249 = vmatpush1.msra.mxu0 0.0
    %1250 = vmatprep.subr.mxu0 0.0
    %1251 = vmatpush1.msra.mxu0 0.0
    %1252 = vmatprep.subr.mxu0 0.0
    %1253 = vmatpush1.msra.mxu0 0.0
    %1254 = vmatprep.subr.mxu0 0.0
    %1255 = vmatpush1.msra.mxu0 0.0
    %1256 = vmatprep.subr.mxu0 0.0
    %1257 = vmatpush1.msra.mxu0 0.0
    %1258 = vmatprep.subr.mxu0 0.0
    %1259 = vmatpush1.msra.mxu0 0.0
    %1260 = vmatprep.subr.mxu0 0.0
    %1261 = vmatpush1.msra.mxu0 0.0
    %1262 = vmatprep.subr.mxu0 0.0
    %1263 = vmatpush1.msra.mxu0 0.0
    %1264 = vmatprep.subr.mxu0 0.0
    %1265 = vmatpush1.msra.mxu0 0.0
    %1266 = vmatprep.subr.mxu0 0.0
    %1267 = vmatpush1.msra.mxu0 0.0
    %1268 = vmatprep.subr.mxu0 0.0
    %1269 = vmatpush1.msra.mxu0 0.0
    %1270 = vmatprep.subr.mxu0 0.0
    %1271 = vmatpush1.msra.mxu0 0.0
    %1272 = vmatprep.subr.mxu0 0.0
    %1273 = vmatpush1.msra.mxu0 0.0
    %1274 = vmatprep.subr.mxu0 0.0
    %1275 = vmatpush1.msra.mxu0 0.0
    %1276 = vmatprep.mubr.f32.mxu0 0.0
    %1277 = vmatmul.mubr.f32.gmra.mrb[0].mxu0 %v1211
    %v1278 = vpop.f32.mrb[0].mxu0
    %v1279 = vadd.f32 0.0, %v1278
    %v1280 = vpop.f32.mrb[0].mxu0
    %v1281 = vadd.f32 0.0, %v1280
    %1282 = vdwg.mxu0
    %1283 = vmatprep.subr.mxu0 %v244
    %1284 = vmatpush1.msra.mxu0 %v243
    %1285 = vmatprep.subr.mxu0 %v248
    %1286 = vmatpush1.msra.mxu0 %v247
    %1287 = vmatprep.subr.mxu0 %v252
    %1288 = vmatpush1.msra.mxu0 %v251
    %1289 = vmatprep.subr.mxu0 %v256
    %1290 = vmatpush1.msra.mxu0 %v255
    %1291 = vmatprep.subr.mxu0 %v260
    %1292 = vmatpush1.msra.mxu0 %v259
    %1293 = vmatprep.subr.mxu0 %v264
    %1294 = vmatpush1.msra.mxu0 %v263
    %1295 = vmatprep.subr.mxu0 %v268
    %1296 = vmatpush1.msra.mxu0 %v267
    %1297 = vmatprep.subr.mxu0 %v272
    %1298 = vmatpush1.msra.mxu0 %v271
    %1299 = vmatprep.subr.mxu0 %v276
    %1300 = vmatpush1.msra.mxu0 %v275
    %1301 = vmatprep.subr.mxu0 %v280
    %1302 = vmatpush1.msra.mxu0 %v279
    %1303 = vmatprep.subr.mxu0 %v284
    %1304 = vmatpush1.msra.mxu0 %v283
    %1305 = vmatprep.subr.mxu0 %v288
    %1306 = vmatpush1.msra.mxu0 %v287
    %1307 = vmatprep.subr.mxu0 %v292
    %1308 = vmatpush1.msra.mxu0 %v291
    %1309 = vmatprep.subr.mxu0 %v296
    %1310 = vmatpush1.msra.mxu0 %v295
    %1311 = vmatprep.subr.mxu0 %v300
    %1312 = vmatpush1.msra.mxu0 %v299
    %1313 = vmatprep.subr.mxu0 %v304
    %1314 = vmatpush1.msra.mxu0 %v303
    %1315 = vmatprep.subr.mxu0 0.0
    %1316 = vmatpush1.msra.mxu0 0.0
    %1317 = vmatprep.subr.mxu0 0.0
    %1318 = vmatpush1.msra.mxu0 0.0
    %1319 = vmatprep.subr.mxu0 0.0
    %1320 = vmatpush1.msra.mxu0 0.0
    %1321 = vmatprep.subr.mxu0 0.0
    %1322 = vmatpush1.msra.mxu0 0.0
    %1323 = vmatprep.subr.mxu0 0.0
    %1324 = vmatpush1.msra.mxu0 0.0
    %1325 = vmatprep.subr.mxu0 0.0
    %1326 = vmatpush1.msra.mxu0 0.0
    %1327 = vmatprep.subr.mxu0 0.0
    %1328 = vmatpush1.msra.mxu0 0.0
    %1329 = vmatprep.subr.mxu0 0.0
    %1330 = vmatpush1.msra.mxu0 0.0
    %1331 = vmatprep.subr.mxu0 0.0
    %1332 = vmatpush1.msra.mxu0 0.0
    %1333 = vmatprep.subr.mxu0 0.0
    %1334 = vmatpush1.msra.mxu0 0.0
    %1335 = vmatprep.subr.mxu0 0.0
    %1336 = vmatpush1.msra.mxu0 0.0
    %1337 = vmatprep.subr.mxu0 0.0
    %1338 = vmatpush1.msra.mxu0 0.0
    %1339 = vmatprep.subr.mxu0 0.0
    %1340 = vmatpush1.msra.mxu0 0.0
    %1341 = vmatprep.subr.mxu0 0.0
    %1342 = vmatpush1.msra.mxu0 0.0
    %1343 = vmatprep.subr.mxu0 0.0
    %1344 = vmatpush1.msra.mxu0 0.0
    %1345 = vmatprep.subr.mxu0 0.0
    %1346 = vmatpush1.msra.mxu0 0.0
    %1347 = vmatprep.mubr.f32.mxu0 0.0
    %1348 = vmatmul.mubr.f32.gmra.mrb[0].mxu0 %v1211
    %v1349 = vpop.f32.mrb[0].mxu0
    %v1350 = vadd.f32 0.0, %v1349
    %v1351 = vpop.f32.mrb[0].mxu0
    %v1352 = vadd.f32 0.0, %v1351
    %1353 = vdwg.mxu0
    %v1358 = vrot.slane %v1279, 6
    %v1359 = vrot.slane %v1281, 6
    %v1360 = vrot.slane %v1350, 6
    %v1361 = vrot.slane %v1352, 6
    %v1366 = vadd.f32 %v160, %v1358
    %v1367 = vadd.f32 %v162, %v1359
    %v1368 = vadd.f32 %v237, %v1360
    %v1369 = vadd.f32 %v239, %v1361
    %v1370 = vxor.u32 %v1366, 2147483648
    %v1371 = vmul.f32 %v1370, 1.442695
    %v1372 = vpow.pop %v1371
    %v1373 = vadd.f32 %v1372, 1.0
    %v1374 = vrcp.pop %v1373
    %v1375 = vmul.f32 1.0, %v1374
    %v1376 = vxor.u32 %v1367, 2147483648
    %v1377 = vmul.f32 %v1376, 1.442695
    %v1378 = vpow.pop %v1377
    %v1379 = vadd.f32 %v1378, 1.0
    %v1380 = vrcp.pop %v1379
    %v1381 = vmul.f32 1.0, %v1380
    %v1382 = vtanh.pop %v1368
    %v1383 = vxor.u32 %v1369, 2147483648
    %v1384 = vmul.f32 %v1383, 1.442695
    %v1385 = vpow.pop %v1384
    %v1386 = vadd.f32 %v1385, 1.0
    %v1387 = vrcp.pop %v1386
    %v1388 = vmul.f32 1.0, %v1387
    %v1390 = vrot.slane %v1209, 6
    %v1392 = vmul.f32 %v1381, %v1390
    %v1393 = vmul.f32 %v1375, %v1382
    %v1394 = vadd.f32 %v1392, %v1393
    %v1395 = vtanh.pop %v1394
    %v1396 = vmul.f32 %v1388, %v1395
    %v1398 = vrot.slane %v1396, 2
    %1400 = vmatprep.subr.mxu0 %v242
    %1401 = vmatpush1.msra.mxu0 %v241
    %1402 = vmatprep.subr.mxu0 %v246
    %1403 = vmatpush1.msra.mxu0 %v245
    %1404 = vmatprep.subr.mxu0 %v250
    %1405 = vmatpush1.msra.mxu0 %v249
    %1406 = vmatprep.subr.mxu0 %v254
    %1407 = vmatpush1.msra.mxu0 %v253
    %1408 = vmatprep.subr.mxu0 %v258
    %1409 = vmatpush1.msra.mxu0 %v257
    %1410 = vmatprep.subr.mxu0 %v262
    %1411 = vmatpush1.msra.mxu0 %v261
    %1412 = vmatprep.subr.mxu0 %v266
    %1413 = vmatpush1.msra.mxu0 %v265
    %1414 = vmatprep.subr.mxu0 %v270
    %1415 = vmatpush1.msra.mxu0 %v269
    %1416 = vmatprep.subr.mxu0 %v274
    %1417 = vmatpush1.msra.mxu0 %v273
    %1418 = vmatprep.subr.mxu0 %v278
    %1419 = vmatpush1.msra.mxu0 %v277
    %1420 = vmatprep.subr.mxu0 %v282
    %1421 = vmatpush1.msra.mxu0 %v281
    %1422 = vmatprep.subr.mxu0 %v286
    %1423 = vmatpush1.msra.mxu0 %v285
    %1424 = vmatprep.subr.mxu0 %v290
    %1425 = vmatpush1.msra.mxu0 %v289
    %1426 = vmatprep.subr.mxu0 %v294
    %1427 = vmatpush1.msra.mxu0 %v293
    %1428 = vmatprep.subr.mxu0 %v298
    %1429 = vmatpush1.msra.mxu0 %v297
    %1430 = vmatprep.subr.mxu0 %v302
    %1431 = vmatpush1.msra.mxu0 %v301
    %1432 = vmatprep.subr.mxu0 0.0
    %1433 = vmatpush1.msra.mxu0 0.0
    %1434 = vmatprep.subr.mxu0 0.0
    %1435 = vmatpush1.msra.mxu0 0.0
    %1436 = vmatprep.subr.mxu0 0.0
    %1437 = vmatpush1.msra.mxu0 0.0
    %1438 = vmatprep.subr.mxu0 0.0
    %1439 = vmatpush1.msra.mxu0 0.0
    %1440 = vmatprep.subr.mxu0 0.0
    %1441 = vmatpush1.msra.mxu0 0.0
    %1442 = vmatprep.subr.mxu0 0.0
    %1443 = vmatpush1.msra.mxu0 0.0
    %1444 = vmatprep.subr.mxu0 0.0
    %1445 = vmatpush1.msra.mxu0 0.0
    %1446 = vmatprep.subr.mxu0 0.0
    %1447 = vmatpush1.msra.mxu0 0.0
    %1448 = vmatprep.subr.mxu0 0.0
    %1449 = vmatpush1.msra.mxu0 0.0
    %1450 = vmatprep.subr.mxu0 0.0
    %1451 = vmatpush1.msra.mxu0 0.0
    %1452 = vmatprep.subr.mxu0 0.0
    %1453 = vmatpush1.msra.mxu0 0.0
    %1454 = vmatprep.subr.mxu0 0.0
    %1455 = vmatpush1.msra.mxu0 0.0
    %1456 = vmatprep.subr.mxu0 0.0
    %1457 = vmatpush1.msra.mxu0 0.0
    %1458 = vmatprep.subr.mxu0 0.0
    %1459 = vmatpush1.msra.mxu0 0.0
    %1460 = vmatprep.subr.mxu0 0.0
    %1461 = vmatpush1.msra.mxu0 0.0
    %1462 = vmatprep.subr.mxu0 0.0
    %1463 = vmatpush1.msra.mxu0 0.0
    %1464 = vmatprep.mubr.f32.mxu0 0.0
    %1465 = vmatmul.mubr.f32.gmra.mrb[0].mxu0 %v1398
    %v1466 = vpop.f32.mrb[0].mxu0
    %v1467 = vadd.f32 0.0, %v1466
    %v1468 = vpop.f32.mrb[0].mxu0
    %v1469 = vadd.f32 0.0, %v1468
    %1470 = vdwg.mxu0
    %1471 = vmatprep.subr.mxu0 %v244
    %1472 = vmatpush1.msra.mxu0 %v243
    %1473 = vmatprep.subr.mxu0 %v248
    %1474 = vmatpush1.msra.mxu0 %v247
    %1475 = vmatprep.subr.mxu0 %v252
    %1476 = vmatpush1.msra.mxu0 %v251
    %1477 = vmatprep.subr.mxu0 %v256
    %1478 = vmatpush1.msra.mxu0 %v255
    %1479 = vmatprep.subr.mxu0 %v260
    %1480 = vmatpush1.msra.mxu0 %v259
    %1481 = vmatprep.subr.mxu0 %v264
    %1482 = vmatpush1.msra.mxu0 %v263
    %1483 = vmatprep.subr.mxu0 %v268
    %1484 = vmatpush1.msra.mxu0 %v267
    %1485 = vmatprep.subr.mxu0 %v272
    %1486 = vmatpush1.msra.mxu0 %v271
    %1487 = vmatprep.subr.mxu0 %v276
    %1488 = vmatpush1.msra.mxu0 %v275
    %1489 = vmatprep.subr.mxu0 %v280
    %1490 = vmatpush1.msra.mxu0 %v279
    %1491 = vmatprep.subr.mxu0 %v284
    %1492 = vmatpush1.msra.mxu0 %v283
    %1493 = vmatprep.subr.mxu0 %v288
    %1494 = vmatpush1.msra.mxu0 %v287
    %1495 = vmatprep.subr.mxu0 %v292
    %1496 = vmatpush1.msra.mxu0 %v291
    %1497 = vmatprep.subr.mxu0 %v296
    %1498 = vmatpush1.msra.mxu0 %v295
    %1499 = vmatprep.subr.mxu0 %v300
    %1500 = vmatpush1.msra.mxu0 %v299
    %1501 = vmatprep.subr.mxu0 %v304
    %1502 = vmatpush1.msra.mxu0 %v303
    %1503 = vmatprep.subr.mxu0 0.0
    %1504 = vmatpush1.msra.mxu0 0.0
    %1505 = vmatprep.subr.mxu0 0.0
    %1506 = vmatpush1.msra.mxu0 0.0
    %1507 = vmatprep.subr.mxu0 0.0
    %1508 = vmatpush1.msra.mxu0 0.0
    %1509 = vmatprep.subr.mxu0 0.0
    %1510 = vmatpush1.msra.mxu0 0.0
    %1511 = vmatprep.subr.mxu0 0.0
    %1512 = vmatpush1.msra.mxu0 0.0
    %1513 = vmatprep.subr.mxu0 0.0
    %1514 = vmatpush1.msra.mxu0 0.0
    %1515 = vmatprep.subr.mxu0 0.0
    %1516 = vmatpush1.msra.mxu0 0.0
    %1517 = vmatprep.subr.mxu0 0.0
    %1518 = vmatpush1.msra.mxu0 0.0
    %1519 = vmatprep.subr.mxu0 0.0
    %1520 = vmatpush1.msra.mxu0 0.0
    %1521 = vmatprep.subr.mxu0 0.0
    %1522 = vmatpush1.msra.mxu0 0.0
    %1523 = vmatprep.subr.mxu0 0.0
    %1524 = vmatpush1.msra.mxu0 0.0
    %1525 = vmatprep.subr.mxu0 0.0
    %1526 = vmatpush1.msra.mxu0 0.0
    %1527 = vmatprep.subr.mxu0 0.0
    %1528 = vmatpush1.msra.mxu0 0.0
    %1529 = vmatprep.subr.mxu0 0.0
    %1530 = vmatpush1.msra.mxu0 0.0
    %1531 = vmatprep.subr.mxu0 0.0
    %1532 = vmatpush1.msra.mxu0 0.0
    %1533 = vmatprep.subr.mxu0 0.0
    %1534 = vmatpush1.msra.mxu0 0.0
    %1535 = vmatprep.mubr.f32.mxu0 0.0
    %1536 = vmatmul.mubr.f32.gmra.mrb[0].mxu0 %v1398
    %v1537 = vpop.f32.mrb[0].mxu0
    %v1538 = vadd.f32 0.0, %v1537
    %v1539 = vpop.f32.mrb[0].mxu0
    %v1540 = vadd.f32 0.0, %v1539
    %1541 = vdwg.mxu0
    %v1546 = vrot.slane %v1467, 4
    %v1547 = vrot.slane %v1469, 4
    %v1548 = vrot.slane %v1538, 4
    %v1549 = vrot.slane %v1540, 4
    %v1554 = vadd.f32 %v160, %v1546
    %v1555 = vadd.f32 %v162, %v1547
    %v1556 = vadd.f32 %v237, %v1548
    %v1557 = vadd.f32 %v239, %v1549
    %v1558 = vxor.u32 %v1554, 2147483648
    %v1559 = vmul.f32 %v1558, 1.442695
    %v1560 = vpow.pop %v1559
    %v1561 = vadd.f32 %v1560, 1.0
    %v1562 = vrcp.pop %v1561
    %v1563 = vmul.f32 1.0, %v1562
    %v1564 = vxor.u32 %v1555, 2147483648
    %v1565 = vmul.f32 %v1564, 1.442695
    %v1566 = vpow.pop %v1565
    %v1567 = vadd.f32 %v1566, 1.0
    %v1568 = vrcp.pop %v1567
    %v1569 = vmul.f32 1.0, %v1568
    %v1570 = vtanh.pop %v1556
    %v1571 = vxor.u32 %v1557, 2147483648
    %v1572 = vmul.f32 %v1571, 1.442695
    %v1573 = vpow.pop %v1572
    %v1574 = vadd.f32 %v1573, 1.0
    %v1575 = vrcp.pop %v1574
    %v1576 = vmul.f32 1.0, %v1575
    %v1578 = vrot.slane %v1394, 6
    %v1580 = vmul.f32 %v1569, %v1578
    %v1581 = vmul.f32 %v1563, %v1570
    %v1582 = vadd.f32 %v1580, %v1581
    %v1583 = vtanh.pop %v1582
    %v1584 = vmul.f32 %v1576, %v1583
    %v1586 = vrot.slane %v1584, 4
    %1588 = vmatprep.subr.mxu0 %v242
    %1589 = vmatpush1.msra.mxu0 %v241
    %1590 = vmatprep.subr.mxu0 %v246
    %1591 = vmatpush1.msra.mxu0 %v245
    %1592 = vmatprep.subr.mxu0 %v250
    %1593 = vmatpush1.msra.mxu0 %v249
    %1594 = vmatprep.subr.mxu0 %v254
    %1595 = vmatpush1.msra.mxu0 %v253
    %1596 = vmatprep.subr.mxu0 %v258
    %1597 = vmatpush1.msra.mxu0 %v257
    %1598 = vmatprep.subr.mxu0 %v262
    %1599 = vmatpush1.msra.mxu0 %v261
    %1600 = vmatprep.subr.mxu0 %v266
    %1601 = vmatpush1.msra.mxu0 %v265
    %1602 = vmatprep.subr.mxu0 %v270
    %1603 = vmatpush1.msra.mxu0 %v269
    %1604 = vmatprep.subr.mxu0 %v274
    %1605 = vmatpush1.msra.mxu0 %v273
    %1606 = vmatprep.subr.mxu0 %v278
    %1607 = vmatpush1.msra.mxu0 %v277
    %1608 = vmatprep.subr.mxu0 %v282
    %1609 = vmatpush1.msra.mxu0 %v281
    %1610 = vmatprep.subr.mxu0 %v286
    %1611 = vmatpush1.msra.mxu0 %v285
    %1612 = vmatprep.subr.mxu0 %v290
    %1613 = vmatpush1.msra.mxu0 %v289
    %1614 = vmatprep.subr.mxu0 %v294
    %1615 = vmatpush1.msra.mxu0 %v293
    %1616 = vmatprep.subr.mxu0 %v298
    %1617 = vmatpush1.msra.mxu0 %v297
    %1618 = vmatprep.subr.mxu0 %v302
    %1619 = vmatpush1.msra.mxu0 %v301
    %1620 = vmatprep.subr.mxu0 0.0
    %1621 = vmatpush1.msra.mxu0 0.0
    %1622 = vmatprep.subr.mxu0 0.0
    %1623 = vmatpush1.msra.mxu0 0.0
    %1624 = vmatprep.subr.mxu0 0.0
    %1625 = vmatpush1.msra.mxu0 0.0
    %1626 = vmatprep.subr.mxu0 0.0
    %1627 = vmatpush1.msra.mxu0 0.0
    %1628 = vmatprep.subr.mxu0 0.0
    %1629 = vmatpush1.msra.mxu0 0.0
    %1630 = vmatprep.subr.mxu0 0.0
    %1631 = vmatpush1.msra.mxu0 0.0
    %1632 = vmatprep.subr.mxu0 0.0
    %1633 = vmatpush1.msra.mxu0 0.0
    %1634 = vmatprep.subr.mxu0 0.0
    %1635 = vmatpush1.msra.mxu0 0.0
    %1636 = vmatprep.subr.mxu0 0.0
    %1637 = vmatpush1.msra.mxu0 0.0
    %1638 = vmatprep.subr.mxu0 0.0
    %1639 = vmatpush1.msra.mxu0 0.0
    %1640 = vmatprep.subr.mxu0 0.0
    %1641 = vmatpush1.msra.mxu0 0.0
    %1642 = vmatprep.subr.mxu0 0.0
    %1643 = vmatpush1.msra.mxu0 0.0
    %1644 = vmatprep.subr.mxu0 0.0
    %1645 = vmatpush1.msra.mxu0 0.0
    %1646 = vmatprep.subr.mxu0 0.0
    %1647 = vmatpush1.msra.mxu0 0.0
    %1648 = vmatprep.subr.mxu0 0.0
    %1649 = vmatpush1.msra.mxu0 0.0
    %1650 = vmatprep.subr.mxu0 0.0
    %1651 = vmatpush1.msra.mxu0 0.0
    %1652 = vmatprep.mubr.f32.mxu0 0.0
    %1653 = vmatmul.mubr.f32.gmra.mrb[0].mxu0 %v1586
    %v1654 = vpop.f32.mrb[0].mxu0
    %v1655 = vadd.f32 0.0, %v1654
    %v1656 = vpop.f32.mrb[0].mxu0
    %v1657 = vadd.f32 0.0, %v1656
    %1658 = vdwg.mxu0
    %1659 = vmatprep.subr.mxu0 %v244
    %1660 = vmatpush1.msra.mxu0 %v243
    %1661 = vmatprep.subr.mxu0 %v248
    %1662 = vmatpush1.msra.mxu0 %v247
    %1663 = vmatprep.subr.mxu0 %v252
    %1664 = vmatpush1.msra.mxu0 %v251
    %1665 = vmatprep.subr.mxu0 %v256
    %1666 = vmatpush1.msra.mxu0 %v255
    %1667 = vmatprep.subr.mxu0 %v260
    %1668 = vmatpush1.msra.mxu0 %v259
    %1669 = vmatprep.subr.mxu0 %v264
    %1670 = vmatpush1.msra.mxu0 %v263
    %1671 = vmatprep.subr.mxu0 %v268
    %1672 = vmatpush1.msra.mxu0 %v267
    %1673 = vmatprep.subr.mxu0 %v272
    %1674 = vmatpush1.msra.mxu0 %v271
    %1675 = vmatprep.subr.mxu0 %v276
    %1676 = vmatpush1.msra.mxu0 %v275
    %1677 = vmatprep.subr.mxu0 %v280
    %1678 = vmatpush1.msra.mxu0 %v279
    %1679 = vmatprep.subr.mxu0 %v284
    %1680 = vmatpush1.msra.mxu0 %v283
    %1681 = vmatprep.subr.mxu0 %v288
    %1682 = vmatpush1.msra.mxu0 %v287
    %1683 = vmatprep.subr.mxu0 %v292
    %1684 = vmatpush1.msra.mxu0 %v291
    %1685 = vmatprep.subr.mxu0 %v296
    %1686 = vmatpush1.msra.mxu0 %v295
    %1687 = vmatprep.subr.mxu0 %v300
    %1688 = vmatpush1.msra.mxu0 %v299
    %1689 = vmatprep.subr.mxu0 %v304
    %1690 = vmatpush1.msra.mxu0 %v303
    %1691 = vmatprep.subr.mxu0 0.0
    %1692 = vmatpush1.msra.mxu0 0.0
    %1693 = vmatprep.subr.mxu0 0.0
    %1694 = vmatpush1.msra.mxu0 0.0
    %1695 = vmatprep.subr.mxu0 0.0
    %1696 = vmatpush1.msra.mxu0 0.0
    %1697 = vmatprep.subr.mxu0 0.0
    %1698 = vmatpush1.msra.mxu0 0.0
    %1699 = vmatprep.subr.mxu0 0.0
    %1700 = vmatpush1.msra.mxu0 0.0
    %1701 = vmatprep.subr.mxu0 0.0
    %1702 = vmatpush1.msra.mxu0 0.0
    %1703 = vmatprep.subr.mxu0 0.0
    %1704 = vmatpush1.msra.mxu0 0.0
    %1705 = vmatprep.subr.mxu0 0.0
    %1706 = vmatpush1.msra.mxu0 0.0
    %1707 = vmatprep.subr.mxu0 0.0
    %1708 = vmatpush1.msra.mxu0 0.0
    %1709 = vmatprep.subr.mxu0 0.0
    %1710 = vmatpush1.msra.mxu0 0.0
    %1711 = vmatprep.subr.mxu0 0.0
    %1712 = vmatpush1.msra.mxu0 0.0
    %1713 = vmatprep.subr.mxu0 0.0
    %1714 = vmatpush1.msra.mxu0 0.0
    %1715 = vmatprep.subr.mxu0 0.0
    %1716 = vmatpush1.msra.mxu0 0.0
    %1717 = vmatprep.subr.mxu0 0.0
    %1718 = vmatpush1.msra.mxu0 0.0
    %1719 = vmatprep.subr.mxu0 0.0
    %1720 = vmatpush1.msra.mxu0 0.0
    %1721 = vmatprep.subr.mxu0 0.0
    %1722 = vmatpush1.msra.mxu0 0.0
    %1723 = vmatprep.mubr.f32.mxu0 0.0
    %1724 = vmatmul.mubr.f32.gmra.mrb[0].mxu0 %v1586
    %v1725 = vpop.f32.mrb[0].mxu0
    %v1726 = vadd.f32 0.0, %v1725
    %v1727 = vpop.f32.mrb[0].mxu0
    %v1728 = vadd.f32 0.0, %v1727
    %1729 = vdwg.mxu0
    %v1734 = vrot.slane %v1655, 2
    %v1735 = vrot.slane %v1657, 2
    %v1736 = vrot.slane %v1726, 2
    %v1737 = vrot.slane %v1728, 2
    %v1742 = vadd.f32 %v160, %v1734
    %v1743 = vadd.f32 %v162, %v1735
    %v1744 = vadd.f32 %v237, %v1736
    %v1745 = vadd.f32 %v239, %v1737
    %v1746 = vxor.u32 %v1742, 2147483648
    %v1747 = vmul.f32 %v1746, 1.442695
    %v1748 = vpow.pop %v1747
    %v1749 = vadd.f32 %v1748, 1.0
    %v1750 = vrcp.pop %v1749
    %v1751 = vmul.f32 1.0, %v1750
    %v1752 = vxor.u32 %v1743, 2147483648
    %v1753 = vmul.f32 %v1752, 1.442695
    %v1754 = vpow.pop %v1753
    %v1755 = vadd.f32 %v1754, 1.0
    %v1756 = vrcp.pop %v1755
    %v1757 = vmul.f32 1.0, %v1756
    %v1758 = vtanh.pop %v1744
    %v1759 = vxor.u32 %v1745, 2147483648
    %v1760 = vmul.f32 %v1759, 1.442695
    %v1761 = vpow.pop %v1760
    %v1762 = vadd.f32 %v1761, 1.0
    %v1763 = vrcp.pop %v1762
    %v1764 = vmul.f32 1.0, %v1763
    %v1766 = vrot.slane %v1582, 6
    %v1768 = vmul.f32 %v1757, %v1766
    %v1769 = vmul.f32 %v1751, %v1758
    %v1770 = vadd.f32 %v1768, %v1769
    %v1771 = vtanh.pop %v1770
    %v1772 = vmul.f32 %v1764, %v1771
    %vm1773 = vcmask 1041408
    %v1774 = vsel %vm1773, %v474, %v659
    %v1775 = vsel %vm78, %v1774, %v847
    %vm1776 = vcmask 1045504
    %v1777 = vsel %vm1776, %v1775, %v1035
    %v1778 = vsel %vm1773, %v1211, %v1396
    %v1779 = vsel %vm78, %v1778, %v1584
    %v1780 = vsel %vm1776, %v1779, %v1772
    %v1781 = vld [vmem:[%s5] sm:$0xff]
    %v1782 = vld [vmem:[%s5 + $0x8] sm:$0xff]
    %v1783 = vld [vmem:[%s5 + $0x10] sm:$0xff]
    %v1784 = vld [vmem:[%s5 + $0x18] sm:$0xff]
    %v1785 = vld [vmem:[%s5 + $0x20] sm:$0xff]
    %v1786 = vld [vmem:[%s5 + $0x28] sm:$0xff]
    %v1787 = vld [vmem:[%s5 + $0x30] sm:$0xff]
    %v1788 = vld [vmem:[%s5 + $0x38] sm:$0xff]
    %v1789 = vld [vmem:[%s5 + $0x40] sm:$0xff]
    %v1790 = vld [vmem:[%s5 + $0x48] sm:$0xff]
    %v1791 = vld [vmem:[%s5 + $0x50] sm:$0xff]
    %v1792 = vld [vmem:[%s5 + $0x58] sm:$0xff]
    %v1793 = vld [vmem:[%s5 + $0x60] sm:$0xff]
    %v1794 = vld [vmem:[%s5 + $0x68] sm:$0xff]
    %v1795 = vld [vmem:[%s5 + $0x70] sm:$0xff]
    %v1796 = vld [vmem:[%s5 + $0x78] sm:$0xff]
    %v1797 = vld [vmem:[%s6] sm:$0x1]
    %v1799 = vlaneseq
    %v1800 = vshrl.u32 %v1799, 7
    %v1801 = vsub.s32 0, %v1800
    %v1802 = vrot.slane %v1797, %v1801
    %1804 = vmatprep.subr.mxu0 0.0
    %1805 = vmatpush1.msra.mxu0 %v1781
    %1806 = vmatprep.subr.mxu0 0.0
    %1807 = vmatpush1.msra.mxu0 %v1782
    %1808 = vmatprep.subr.mxu0 0.0
    %1809 = vmatpush1.msra.mxu0 %v1783
    %1810 = vmatprep.subr.mxu0 0.0
    %1811 = vmatpush1.msra.mxu0 %v1784
    %1812 = vmatprep.subr.mxu0 0.0
    %1813 = vmatpush1.msra.mxu0 %v1785
    %1814 = vmatprep.subr.mxu0 0.0
    %1815 = vmatpush1.msra.mxu0 %v1786
    %1816 = vmatprep.subr.mxu0 0.0
    %1817 = vmatpush1.msra.mxu0 %v1787
    %1818 = vmatprep.subr.mxu0 0.0
    %1819 = vmatpush1.msra.mxu0 %v1788
    %1820 = vmatprep.subr.mxu0 0.0
    %1821 = vmatpush1.msra.mxu0 %v1789
    %1822 = vmatprep.subr.mxu0 0.0
    %1823 = vmatpush1.msra.mxu0 %v1790
    %1824 = vmatprep.subr.mxu0 0.0
    %1825 = vmatpush1.msra.mxu0 %v1791
    %1826 = vmatprep.subr.mxu0 0.0
    %1827 = vmatpush1.msra.mxu0 %v1792
    %1828 = vmatprep.subr.mxu0 0.0
    %1829 = vmatpush1.msra.mxu0 %v1793
    %1830 = vmatprep.subr.mxu0 0.0
    %1831 = vmatpush1.msra.mxu0 %v1794
    %1832 = vmatprep.subr.mxu0 0.0
    %1833 = vmatpush1.msra.mxu0 %v1795
    %1834 = vmatprep.subr.mxu0 0.0
    %1835 = vmatpush1.msra.mxu0 %v1796
    %1836 = vmatprep.subr.mxu0 0.0
    %1837 = vmatpush1.msra.mxu0 0.0
    %1838 = vmatprep.subr.mxu0 0.0
    %1839 = vmatpush1.msra.mxu0 0.0
    %1840 = vmatprep.subr.mxu0 0.0
    %1841 = vmatpush1.msra.mxu0 0.0
    %1842 = vmatprep.subr.mxu0 0.0
    %1843 = vmatpush1.msra.mxu0 0.0
    %1844 = vmatprep.subr.mxu0 0.0
    %1845 = vmatpush1.msra.mxu0 0.0
    %1846 = vmatprep.subr.mxu0 0.0
    %1847 = vmatpush1.msra.mxu0 0.0
    %1848 = vmatprep.subr.mxu0 0.0
    %1849 = vmatpush1.msra.mxu0 0.0
    %1850 = vmatprep.subr.mxu0 0.0
    %1851 = vmatpush1.msra.mxu0 0.0
    %1852 = vmatprep.subr.mxu0 0.0
    %1853 = vmatpush1.msra.mxu0 0.0
    %1854 = vmatprep.subr.mxu0 0.0
    %1855 = vmatpush1.msra.mxu0 0.0
    %1856 = vmatprep.subr.mxu0 0.0
    %1857 = vmatpush1.msra.mxu0 0.0
    %1858 = vmatprep.subr.mxu0 0.0
    %1859 = vmatpush1.msra.mxu0 0.0
    %1860 = vmatprep.subr.mxu0 0.0
    %1861 = vmatpush1.msra.mxu0 0.0
    %1862 = vmatprep.subr.mxu0 0.0
    %1863 = vmatpush1.msra.mxu0 0.0
    %1864 = vmatprep.subr.mxu0 0.0
    %1865 = vmatpush1.msra.mxu0 0.0
    %1866 = vmatprep.subr.mxu0 0.0
    %1867 = vmatpush1.msra.mxu0 0.0
    %1868 = vmatprep.mubr.f32.mxu0 0.0
    %1869 = vmatmul.mubr.f32.gmra.mrb[0].mxu0 %v1777
    %v1870 = vpop.f32.mrb[0].mxu0
    %v1871 = vadd.f32 %v1802, %v1870
    %v1872 = vpop.f32.mrb[0].mxu0
    %1873 = vmatprep.mubr.f32.mxu0 0.0
    %1874 = vmatmul.mubr.f32.gmra.mrb[0].mxu0 %v1780
    %v1875 = vpop.f32.mrb[0].mxu0
    %v1876 = vadd.f32 %v1802, %v1875
    %v1877 = vpop.f32.mrb[0].mxu0
    %1878 = vdwg.mxu0
    %v1879 = vmul.f32 %v1871, 10.0
    %v1880 = vmul.f32 %v1876, 10.0
    %v1881 = vsel %vm71, %v1879, -inf
    %1882 = vmax.xlane.f32.xlu0 %v1881
    %v1883 = vpop.xlane.xlu0 %1882
    %v1884 = vsel %vm71, %v1880, -inf
    %1885 = vmax.xlane.f32.xlu0 %v1884
    %v1886 = vpop.xlane.xlu0 %1885
    %v1887 = vsub.f32 %v1879, %v1883
    %v1888 = vsub.f32 %v1880, %v1886
    %v1889 = vmul.f32 %v1887, 1.442695
    %v1890 = vpow.pop %v1889
    %v1891 = vmul.f32 %v1888, 1.442695
    %v1892 = vpow.pop %v1891
    %v1893 = vsel %vm71, %v1890, 0.0
    %1894 = vadd.xlane.f32.xlu0 %v1893
    %v1895 = vpop.xlane.xlu0 %1894
    %v1896 = vsel %vm71, %v1892, 0.0
    %1897 = vadd.xlane.f32.xlu0 %v1896
    %v1898 = vpop.xlane.xlu0 %1897
    %v1899 = vrcp.pop %v1895
    %v1900 = vrcp.pop %v1898
    %v1901 = vmul.f32 %v1890, %v1899
    %v1902 = vmul.f32 %v1892, %v1900
    %v1903 = vld [vmem:[%s1] sm:$0xff]
    %v1904 = vld [vmem:[%s1 + $0x8] sm:$0xff]
    %v1905 = vmul.f32 %v1901, %v1903
    %v1906 = vmul.f32 %v1902, %v1904
    %v1907 = vsel %vm71, %v1905, 0.0
    %1908 = vadd.xlane.f32.xlu0 %v1907
    %v1909 = vpop.xlane.xlu0 %1908
    %v1910 = vsel %vm71, %v1906, 0.0
    %1911 = vadd.xlane.f32.xlu0 %v1910
    %v1912 = vpop.xlane.xlu0 %1911
    %v1913 = vlaneseq
    %v1914 = vshrl.u32 %v1913, 7
    %v1915 = vadd.s32 %v1914, 8
    %v1916 = vlaneseq
    %v1917 = vand.u32 %v1916, 127
    %vm1918 = vcmp.lt.s32.totalorder %v1914, 0
    %v1919 = vsub.s32 0, %v1914
    %v1920 = vsel %vm1918, %v1919, %v1914
    %v1921 = vshrl.u32 %v1920, 1
    %v1922 = vand.u32 %v1920, 1
    %v1923 = vsub.s32 0, %v1922
    %v1924 = vsel %vm1918, %v1923, %v1922
    %vm1925 = vcmp.lt.s32.totalorder %v1915, 0
    %v1926 = vsub.s32 0, %v1915
    %v1927 = vsel %vm1925, %v1926, %v1915
    %v1928 = vshrl.u32 %v1927, 1
    %v1929 = vand.u32 %v1927, 1
    %v1930 = vsub.s32 0, %v1929
    %v1931 = vsel %vm1925, %v1930, %v1929
    %vm1932 = vcmp.ne.s32.totalorder %v1924, 0
    %vm1933 = vcmp.ne.s32.totalorder %v1931, 0
    %vm1934 = vcmp.lt.s32.totalorder %v1924, 0
    %vm1935 = vcmp.lt.s32.totalorder %v1931, 0
    %vm1936 = vmand %vm1934, %vm1932
    %vm1937 = vmand %vm1935, %vm1933
    %v1938 = vadd.s32 %v1924, 2
    %v1939 = vadd.s32 %v1931, 2
    %v1940 = vsel %vm1936, %v1938, %v1924
    %v1941 = vsel %vm1937, %v1939, %v1931
    %vm1942 = vcmp.eq.s32.totalorder %v1940, %v1917
    %vm1943 = vcmp.eq.s32.totalorder %v1941, %v1917
    %v1944 = vsel %vm1942, 1, 0
    %v1945 = vsel %vm1943, 1, 0
    %v1946 = vcvt.s32.f32 %v1944
    %v1947 = vcvt.s32.f32 %v1945
    %v1948 = vmul.f32 %v1909, %v1946
    %v1949 = vmul.f32 %v1912, %v1947
    %vm1950 = vcmask 15360
    %v1951 = vsel %vm1950, %v1948, 0.0
    %v1952 = vsel %vm1950, %v1949, 0.0
    %v1953 = vadd.f32 %v1951, %v1952
    %v1954 = vrot.slane %v1953, 4
    %v1955 = vadd.f32 %v1953, %v1954
    %v1956 = vrot.slane %v1955, 2
    %v1957 = vadd.f32 %v1955, %v1956
    %v1958 = vrot.slane %v1957, 1
    %v1959 = vadd.f32 %v1957, %v1958
    %v1960 = vmul.f32 %v1959, 0.125
    %v1961 = vsub.f32 %v1909, %v1960
    %v1962 = vsub.f32 %v1912, %v1960
    %v1963 = vmul.f32 %v1961, %v1946
    %v1964 = vmul.f32 %v1962, %v1947
    %v1965 = vmul.f32 %v1963, %v1963
    %v1966 = vmul.f32 %v1964, %v1964
    %v1967 = vsel %vm1950, %v1965, 0.0
    %v1968 = vsel %vm1950, %v1966, 0.0
    %v1969 = vadd.f32 %v1967, %v1968
    %v1970 = vrot.slane %v1969, 4
    %v1971 = vadd.f32 %v1969, %v1970
    %v1972 = vrot.slane %v1971, 2
    %v1973 = vadd.f32 %v1971, %v1972
    %v1974 = vrot.slane %v1973, 1
    %v1975 = vadd.f32 %v1973, %v1974
    %v1976 = vmul.f32 %v1975, 0.14285715
    %v1977 = vrsqrt.pop %v1976
    %v1978 = vmul.f32 %v1976, %v1977
    %vm1979 = vcmp.eq.f32.partialorder %v1976, inf
    %v1980 = vsel %vm1979, %v1976, %v1978
    %vm1981 = vcmp.eq.f32.partialorder %v1976, 0.0
    %v1982 = vand.u32 %v1976, 2147483648
    %v1983 = vsel %vm1981, %v1982, %v1980
    %v1984 = vadd.f32 %v1983, 1e-12
    %v1985 = vrcp.pop %v1984
    %v1986 = vmul.f32 %v1960, %v1985
    %v1987 = vsel %vm1950, %v1986, 0.0
    %1988 = vadd.xlane.f32.xlu0 %v1987
    %v1989 = vpop.xlane.xlu0 %1988
    %s1990 = vtos %v1989
    %s1991 = smul.f32 %s1990, 0.5
    %s1992 = ssub.f32 0.0, %s1991
    %s1993 = scalar_lea.smem [#allocation5], 0
    %1994 = sst [smem:[%s1993]] %s1992
    // Predicated region
    $region34: #{tpu_custom_call.1} parent=1 // pred_check
      _
    $region35: #{tpu_custom_call.1} parent=1 // pred_check_branch
      %1996 = sbr.rel (0) target = $region37
    $region36: #{tpu_custom_call.1} parent=1 // pred_region
      %s1998 = ssub.s32 16, 16
      %1999 = vsyncadd [#allocation4], %s1998
      %2002 = dma.smem_to_hbm [#allocation5], 16, %s7, [#allocation4]
    $region37: #{tpu_custom_call.1} parent=1 // pred_fallthru
      _
    // Predicated region
    $region38: #{tpu_custom_call.1} parent=1 // pred_check
      _
    $region39: #{tpu_custom_call.1} parent=1 // pred_check_branch
      %2004 = sbr.rel (0) target = $region41
    $region40: #{tpu_custom_call.1} parent=1 // pred_region
      %2005 = dma.done [#allocation4], 16
    $region41: #{tpu_custom_call.1} parent=1 // pred_fallthru
      _
    %2006 = sfence
    %2007 = vsyncpa [#allocation3], 1
    %2008 = vsyncpa [#allocation4], 1

</llo_original>
